<compile_context>
chip_gen: v7x
topology: tpu7x:2x2x1
jax: 0.10.0
libtpu: 0.0.40
codegen_flags: <defaults>
</compile_context>

<pallas_src>
import functools

import jax
import jax.numpy as jnp
from jax import lax
from jax.experimental import pallas as pl
from jax.experimental.pallas import tpu as pltpu

# Scaled-down hyperparameters (PyTorch globals are n_embd=384, block_size=128);
# identical semantics at a small, lane-dense, runnable size.
N_EMBD = 128
NUM_HEADS = 4
HEAD_SIZE = 32          # NUM_HEADS * HEAD_SIZE == N_EMBD (lane-dense: 128)
BATCH = 2
SEQ = 8                 # T (<= block_size); causal tril mask uses first T rows/cols


def _mha_kernel(x_ref, wqkv_ref, wp_ref, bp_ref, o_ref, qkv_ref, *,
                seq, num_heads, head_size, compute_dtype):
    T, H, hs = seq, num_heads, head_size
    C = o_ref.shape[1]
    exact = compute_dtype == jnp.float32

    # One fused, lane-dense QKV projection for this batch element:
    # (T, C) @ (C, 3*H*hs) -> f32.  Scale is already folded into the Q columns.
    qkv = jnp.dot(x_ref[...], wqkv_ref[...], preferred_element_type=jnp.float32)
    # Stage in VMEM scratch (compute dtype): bounds vreg live ranges across the
    # unrolled head loop and feeds per-head (T, hs) loads directly in MXU dtype.
    qkv_ref[...] = qkv.astype(compute_dtype)

    # Causal mask via TPU-friendly 2-D iota.  Large finite negative instead of
    # -inf so a fully masked row never NaNs.
    row = lax.broadcasted_iota(jnp.int32, (T, T), 0)
    col = lax.broadcasted_iota(jnp.int32, (T, T), 1)
    causal = col <= row
    neg_big = jnp.float32(-1e30)

    q_off, k_off, v_off = 0, H * hs, 2 * H * hs
    acc = jnp.zeros((T, C), dtype=jnp.float32)

    for h in range(H):                      # small static unroll over heads only
        q = qkv_ref[:, q_off + h * hs: q_off + (h + 1) * hs]   # (T, hs)
        k = qkv_ref[:, k_off + h * hs: k_off + (h + 1) * hs]
        v = qkv_ref[:, v_off + h * hs: v_off + (h + 1) * hs]

        # q @ k^T without materializing a transpose: contract both on axis 1 (hs).
        s = lax.dot_general(q, k, (((1,), (1,)), ((), ())),
                            preferred_element_type=jnp.float32)            # (T, T)
        s = jnp.where(causal, s, neg_big)

        # Numerically stable softmax, all in f32.
        s = s - jnp.max(s, axis=-1, keepdims=True)
        p = jnp.exp(s)
        denom = jnp.sum(p, axis=-1, keepdims=True)
        # Exact reciprocal on the f32 path; EUP approx reciprocal on bf16 path.
        p = p * pl.reciprocal(denom, approx=not exact)

        out_h = jnp.dot(p.astype(compute_dtype), v,
                        preferred_element_type=jnp.float32)                # (T, hs)

        # Fold the output projection into a per-head accumulation over lane-dense
        # C=128 columns — no concat slab, no 32-lane masked stores.
        acc = acc + jnp.dot(out_h.astype(compute_dtype),
                            wp_ref[h * hs:(h + 1) * hs, :],
                            preferred_element_type=jnp.float32)            # (T, C)

    # TODO(synk): dropout (p=0.2) on attention weights and on the projection output
    # is identity here (eval-mode forward); no RNG-based dropout is applied.
    o_ref[...] = (acc + bp_ref[...]).astype(o_ref.dtype)


def multi_head_attention(x, wq_pt, wk_pt, wv_pt, wp_pt, bp, *,
                         compute_dtype=jnp.float32):
    """x: (B, T, C).  w{q,k,v}_pt: (H, hs, C) PyTorch nn.Linear weights per head.
    wp_pt: (C, H*hs) PyTorch proj weight, bp: (C,) proj bias."""
    B, T, C = x.shape
    H, hs, _ = wq_pt.shape
    scale = hs ** -0.5

    # Plain-JAX weight repack (for a real model, precompute these once as parameters
    # and pass them in directly — this is per-call overhead only at toy scale).
    def stack(w):   # (H, hs, C) -> (C, H*hs), head-major columns (torch.cat order)
        return jnp.transpose(w, (2, 0, 1)).reshape(C, H * hs)

    # Fused (C, 3*H*hs) QKV weight with the 1/sqrt(hs) scale folded into Q columns.
    wqkv = jnp.concatenate([stack(wq_pt) * scale, stack(wk_pt), stack(wv_pt)], axis=1)
    wp = wp_pt.T                                   # (H*hs, C)

    x_c = x.astype(compute_dtype)
    wqkv = wqkv.astype(compute_dtype)
    wp = wp.astype(compute_dtype)
    bp2 = bp.reshape(1, C).astype(jnp.float32)

    kernel = functools.partial(_mha_kernel, seq=T, num_heads=H,
                               head_size=hs, compute_dtype=compute_dtype)

    out = pl.pallas_call(
        kernel,
        out_shape=jax.ShapeDtypeStruct((B, T, C), x.dtype),
        grid_spec=pltpu.PrefetchScalarGridSpec(
            num_scalar_prefetch=0,
            # Batch as a parallel grid axis: lets v7x's two TensorCores split the
            # work and avoids static-unrolled batch chains in the kernel body.
            grid=(B,),
            in_specs=[
                pl.BlockSpec((None, T, C), lambda b: (b, 0, 0)),        # x (one batch row)
                pl.BlockSpec((C, 3 * H * hs), lambda b: (0, 0)),        # fused QKV weight
                pl.BlockSpec((H * hs, C), lambda b: (0, 0)),            # proj weight (transposed)
                pl.BlockSpec((1, C), lambda b: (0, 0)),                 # proj bias
            ],
            out_specs=pl.BlockSpec((None, T, C), lambda b: (b, 0, 0)),
            # Staging scratch for the fused QKV result (compute dtype).
            scratch_shapes=[pltpu.VMEM((T, 3 * H * hs), compute_dtype)],
        ),
        compiler_params=pltpu.CompilerParams(
            dimension_semantics=("parallel",)),
    )(x_c, wqkv, wp, bp2)
    return out


def reference_mha(x, wq_pt, wk_pt, wv_pt, wp_pt, bp):
    """Pure-JAX reference mirroring the PyTorch forward (dropout = identity)."""
    B, T, C = x.shape
    H, hs, _ = wq_pt.shape
    causal = jnp.tril(jnp.ones((T, T), dtype=bool))
    outs = []
    for h in range(H):
        q = x @ wq_pt[h].T
        k = x @ wk_pt[h].T
        v = x @ wv_pt[h].T
        wei = (q @ jnp.swapaxes(k, -1, -2)) * hs ** -0.5
        wei = jnp.where(causal, wei, -jnp.inf)
        wei = jax.nn.softmax(wei, axis=-1)
        outs.append(wei @ v)
    out = jnp.concatenate(outs, axis=-1)
    return out @ wp_pt.T + bp


if __name__ == "__main__":
    key = jax.random.PRNGKey(0)
    kx, kq, kk, kv, kp, kb = jax.random.split(key, 6)

    x = jax.random.normal(kx, (BATCH, SEQ, N_EMBD), dtype=jnp.float32)

    # PyTorch nn.Linear(in, out, bias=False) weight shape is (out, in) = (hs, C).
    wq_pt = 0.02 * jax.random.normal(kq, (NUM_HEADS, HEAD_SIZE, N_EMBD), dtype=jnp.float32)
    wk_pt = 0.02 * jax.random.normal(kk, (NUM_HEADS, HEAD_SIZE, N_EMBD), dtype=jnp.float32)
    wv_pt = 0.02 * jax.random.normal(kv, (NUM_HEADS, HEAD_SIZE, N_EMBD), dtype=jnp.float32)
    wp_pt = 0.02 * jax.random.normal(kp, (N_EMBD, NUM_HEADS * HEAD_SIZE), dtype=jnp.float32)
    bp = 0.02 * jax.random.normal(kb, (N_EMBD,), dtype=jnp.float32)

    ref = reference_mha(x, wq_pt, wk_pt, wv_pt, wp_pt, bp)

    # f32 path: exact reciprocal, checked tightly.
    out = multi_head_attention(x, wq_pt, wk_pt, wv_pt, wp_pt, bp,
                               compute_dtype=jnp.float32)
    out = jax.block_until_ready(out)
    assert out.shape == (BATCH, SEQ, N_EMBD)
    assert jnp.allclose(out, ref, atol=1e-3, rtol=1e-3), "f32 mismatch vs JAX reference"

    # bf16 MXU-input path (valid on v5e/v6e/v7x): f32 accumulation + f32 softmax,
    # looser tolerance bounded by the input cast.
    out_bf16 = multi_head_attention(x, wq_pt, wk_pt, wv_pt, wp_pt, bp,
                                    compute_dtype=jnp.bfloat16)
    out_bf16 = jax.block_until_ready(out_bf16)
    assert jnp.allclose(out_bf16.astype(jnp.float32), ref, atol=5e-2, rtol=5e-2), \
        "bf16 mismatch vs JAX reference"

    print("KERNEL_OK")
</pallas_src>

<mosaic_0001>
module attributes {stable_mosaic.version = 11 : i64} {
  func.func @_mha_kernel(%arg0: i32, %arg1: memref<1x8x128xf32, #tpu.memory_space<vmem>>, %arg2: memref<128x384xf32, #tpu.memory_space<vmem>>, %arg3: memref<128x128xf32, #tpu.memory_space<vmem>>, %arg4: memref<1x128xf32, #tpu.memory_space<vmem>>, %arg5: memref<1x8x128xf32, #tpu.memory_space<vmem>>, %arg6: memref<8x384xf32, #tpu.memory_space<vmem>>) attributes {dimension_semantics = [#tpu.dimension_semantics<parallel>], iteration_bounds = array<i64: 2>, scalar_prefetch = 0 : i64, scratch_operands = 1 : i64, tpu.core_type = #tpu.core_type<tc>, window_params = [{transform_indices = @transform_0, window_bounds = array<i64: 1, 8, 128>}, {pipeline_mode = #tpu.pipeline_mode<synchronous>, transform_indices = @transform_1, window_bounds = array<i64: 128, 384>}, {pipeline_mode = #tpu.pipeline_mode<synchronous>, transform_indices = @transform_2, window_bounds = array<i64: 128, 128>}, {pipeline_mode = #tpu.pipeline_mode<synchronous>, transform_indices = @transform_3, window_bounds = array<i64: 1, 128>}, {transform_indices = @transform_4, window_bounds = array<i64: 1, 8, 128>}]} {
    %c0 = arith.constant 0 : index
    %c0_0 = arith.constant 0 : index
    %c0_1 = arith.constant 0 : index
    %0 = vector.load %arg1[%c0, %c0_0, %c0_1] : memref<1x8x128xf32, #tpu.memory_space<vmem>>, vector<1x8x128xf32>
    %1 = vector.shape_cast %0 : vector<1x8x128xf32> to vector<8x128xf32>
    %c0_2 = arith.constant 0 : index
    %c0_3 = arith.constant 0 : index
    %2 = vector.load %arg2[%c0_2, %c0_3] : memref<128x384xf32, #tpu.memory_space<vmem>>, vector<128x384xf32>
    %cst = arith.constant dense<0.000000e+00> : vector<8x384xf32>
    %3 = tpu.matmul %1, %2, %cst {dimension_numbers = #tpu.dot_dimension_numbers<[1], [0], [0], [1], [0, 0, 1, 1], [], []>} : vector<8x128xf32>, vector<128x384xf32>, vector<8x384xf32> -> vector<8x384xf32>
    %c0_4 = arith.constant 0 : index
    %c0_5 = arith.constant 0 : index
    %4 = vector.load %arg6[%c0_4, %c0_5] : memref<8x384xf32, #tpu.memory_space<vmem>>, vector<8x384xf32>
    tpu.vector_store %arg6[%c0_4, %c0_5], %3 {strides = array<i32>} : memref<8x384xf32, #tpu.memory_space<vmem>>, vector<8x384xf32>,
    %5 = tpu.iota {dimensions = array<i32: 0>} : vector<8x8xi32>
    %6 = tpu.iota {dimensions = array<i32: 1>} : vector<8x8xi32>
    %7 = arith.cmpi sle, %6, %5 : vector<8x8xi32>
    %cst_6 = arith.constant 0.000000e+00 : f32
    %8 = vector.broadcast %cst_6 : f32 to vector<8x128xf32>
    %c0_7 = arith.constant 0 : index
    %c0_8 = arith.constant 0 : index
    %9 = vector.load %arg6[%c0_7, %c0_8] : memref<8x384xf32, #tpu.memory_space<vmem>>, vector<8x32xf32>
    %c0_9 = arith.constant 0 : index
    %c128 = arith.constant 128 : index
    %10 = vector.load %arg6[%c0_9, %c128] : memref<8x384xf32, #tpu.memory_space<vmem>>, vector<8x32xf32>
    %c0_10 = arith.constant 0 : index
    %c256 = arith.constant 256 : index
    %11 = vector.load %arg6[%c0_10, %c256] : memref<8x384xf32, #tpu.memory_space<vmem>>, vector<8x32xf32>
    %cst_11 = arith.constant dense<0.000000e+00> : vector<8x8xf32>
    %12 = tpu.matmul %9, %10, %cst_11 {dimension_numbers = #tpu.dot_dimension_numbers<[1], [1], [0], [0], [0, 0, 1, 0], [], []>} : vector<8x32xf32>, vector<8x32xf32>, vector<8x8xf32> -> vector<8x8xf32>
    %cst_12 = arith.constant -1.000000e+30 : f32
    %13 = vector.broadcast %cst_12 : f32 to vector<8x8xf32>
    %14 = arith.select %7, %12, %13 : vector<8x8xi1>, vector<8x8xf32>
    %cst_13 = arith.constant dense<0xFF800000> : vector<8xf32>
    %15 = vector.multi_reduction <maximumf>, %14, %cst_13 [1] : vector<8x8xf32> to vector<8xf32>
    %16 = vector.shape_cast %15 : vector<8xf32> to vector<8x1xf32>
    %17 = vector.broadcast %16 : vector<8x1xf32> to vector<8x8xf32>
    %18 = arith.subf %14, %17 : vector<8x8xf32>
    %19 = math.exp %18 : vector<8x8xf32>
    %cst_14 = arith.constant dense<0.000000e+00> : vector<8xf32>
    %20 = vector.multi_reduction <add>, %19, %cst_14 [1] : vector<8x8xf32> to vector<8xf32>
    %21 = vector.shape_cast %20 : vector<8xf32> to vector<8x1xf32>
    %22 = tpu.reciprocal %21 : vector<8x1xf32> -> vector<8x1xf32>
    %23 = vector.broadcast %22 : vector<8x1xf32> to vector<8x8xf32>
    %24 = arith.mulf %19, %23 : vector<8x8xf32>
    %cst_15 = arith.constant dense<0.000000e+00> : vector<8x32xf32>
    %25 = tpu.matmul %24, %11, %cst_15 {dimension_numbers = #tpu.dot_dimension_numbers<[1], [0], [0], [1], [0, 0, 1, 1], [], []>} : vector<8x8xf32>, vector<8x32xf32>, vector<8x32xf32> -> vector<8x32xf32>
    %c0_16 = arith.constant 0 : index
    %c0_17 = arith.constant 0 : index
    %26 = vector.load %arg3[%c0_16, %c0_17] : memref<128x128xf32, #tpu.memory_space<vmem>>, vector<32x128xf32>
    %cst_18 = arith.constant dense<0.000000e+00> : vector<8x128xf32>
    %27 = tpu.matmul %25, %26, %cst_18 {dimension_numbers = #tpu.dot_dimension_numbers<[1], [0], [0], [1], [0, 0, 1, 1], [], []>} : vector<8x32xf32>, vector<32x128xf32>, vector<8x128xf32> -> vector<8x128xf32>
    %28 = arith.addf %8, %27 : vector<8x128xf32>
    %c0_19 = arith.constant 0 : index
    %c32 = arith.constant 32 : index
    %29 = vector.load %arg6[%c0_19, %c32] : memref<8x384xf32, #tpu.memory_space<vmem>>, vector<8x32xf32>
    %c0_20 = arith.constant 0 : index
    %c160 = arith.constant 160 : index
    %30 = vector.load %arg6[%c0_20, %c160] : memref<8x384xf32, #tpu.memory_space<vmem>>, vector<8x32xf32>
    %c0_21 = arith.constant 0 : index
    %c288 = arith.constant 288 : index
    %31 = vector.load %arg6[%c0_21, %c288] : memref<8x384xf32, #tpu.memory_space<vmem>>, vector<8x32xf32>
    %cst_22 = arith.constant dense<0.000000e+00> : vector<8x8xf32>
    %32 = tpu.matmul %29, %30, %cst_22 {dimension_numbers = #tpu.dot_dimension_numbers<[1], [1], [0], [0], [0, 0, 1, 0], [], []>} : vector<8x32xf32>, vector<8x32xf32>, vector<8x8xf32> -> vector<8x8xf32>
    %cst_23 = arith.constant -1.000000e+30 : f32
    %33 = vector.broadcast %cst_23 : f32 to vector<8x8xf32>
    %34 = arith.select %7, %32, %33 : vector<8x8xi1>, vector<8x8xf32>
    %cst_24 = arith.constant dense<0xFF800000> : vector<8xf32>
    %35 = vector.multi_reduction <maximumf>, %34, %cst_24 [1] : vector<8x8xf32> to vector<8xf32>
    %36 = vector.shape_cast %35 : vector<8xf32> to vector<8x1xf32>
    %37 = vector.broadcast %36 : vector<8x1xf32> to vector<8x8xf32>
    %38 = arith.subf %34, %37 : vector<8x8xf32>
    %39 = math.exp %38 : vector<8x8xf32>
    %cst_25 = arith.constant dense<0.000000e+00> : vector<8xf32>
    %40 = vector.multi_reduction <add>, %39, %cst_25 [1] : vector<8x8xf32> to vector<8xf32>
    %41 = vector.shape_cast %40 : vector<8xf32> to vector<8x1xf32>
    %42 = tpu.reciprocal %41 : vector<8x1xf32> -> vector<8x1xf32>
    %43 = vector.broadcast %42 : vector<8x1xf32> to vector<8x8xf32>
    %44 = arith.mulf %39, %43 : vector<8x8xf32>
    %cst_26 = arith.constant dense<0.000000e+00> : vector<8x32xf32>
    %45 = tpu.matmul %44, %31, %cst_26 {dimension_numbers = #tpu.dot_dimension_numbers<[1], [0], [0], [1], [0, 0, 1, 1], [], []>} : vector<8x8xf32>, vector<8x32xf32>, vector<8x32xf32> -> vector<8x32xf32>
    %c32_27 = arith.constant 32 : index
    %c0_28 = arith.constant 0 : index
    %46 = vector.load %arg3[%c32_27, %c0_28] : memref<128x128xf32, #tpu.memory_space<vmem>>, vector<32x128xf32>
    %cst_29 = arith.constant dense<0.000000e+00> : vector<8x128xf32>
    %47 = tpu.matmul %45, %46, %cst_29 {dimension_numbers = #tpu.dot_dimension_numbers<[1], [0], [0], [1], [0, 0, 1, 1], [], []>} : vector<8x32xf32>, vector<32x128xf32>, vector<8x128xf32> -> vector<8x128xf32>
    %48 = arith.addf %28, %47 : vector<8x128xf32>
    %c0_30 = arith.constant 0 : index
    %c64 = arith.constant 64 : index
    %49 = vector.load %arg6[%c0_30, %c64] : memref<8x384xf32, #tpu.memory_space<vmem>>, vector<8x32xf32>
    %c0_31 = arith.constant 0 : index
    %c192 = arith.constant 192 : index
    %50 = vector.load %arg6[%c0_31, %c192] : memref<8x384xf32, #tpu.memory_space<vmem>>, vector<8x32xf32>
    %c0_32 = arith.constant 0 : index
    %c320 = arith.constant 320 : index
    %51 = vector.load %arg6[%c0_32, %c320] : memref<8x384xf32, #tpu.memory_space<vmem>>, vector<8x32xf32>
    %cst_33 = arith.constant dense<0.000000e+00> : vector<8x8xf32>
    %52 = tpu.matmul %49, %50, %cst_33 {dimension_numbers = #tpu.dot_dimension_numbers<[1], [1], [0], [0], [0, 0, 1, 0], [], []>} : vector<8x32xf32>, vector<8x32xf32>, vector<8x8xf32> -> vector<8x8xf32>
    %cst_34 = arith.constant -1.000000e+30 : f32
    %53 = vector.broadcast %cst_34 : f32 to vector<8x8xf32>
    %54 = arith.select %7, %52, %53 : vector<8x8xi1>, vector<8x8xf32>
    %cst_35 = arith.constant dense<0xFF800000> : vector<8xf32>
    %55 = vector.multi_reduction <maximumf>, %54, %cst_35 [1] : vector<8x8xf32> to vector<8xf32>
    %56 = vector.shape_cast %55 : vector<8xf32> to vector<8x1xf32>
    %57 = vector.broadcast %56 : vector<8x1xf32> to vector<8x8xf32>
    %58 = arith.subf %54, %57 : vector<8x8xf32>
    %59 = math.exp %58 : vector<8x8xf32>
    %cst_36 = arith.constant dense<0.000000e+00> : vector<8xf32>
    %60 = vector.multi_reduction <add>, %59, %cst_36 [1] : vector<8x8xf32> to vector<8xf32>
    %61 = vector.shape_cast %60 : vector<8xf32> to vector<8x1xf32>
    %62 = tpu.reciprocal %61 : vector<8x1xf32> -> vector<8x1xf32>
    %63 = vector.broadcast %62 : vector<8x1xf32> to vector<8x8xf32>
    %64 = arith.mulf %59, %63 : vector<8x8xf32>
    %cst_37 = arith.constant dense<0.000000e+00> : vector<8x32xf32>
    %65 = tpu.matmul %64, %51, %cst_37 {dimension_numbers = #tpu.dot_dimension_numbers<[1], [0], [0], [1], [0, 0, 1, 1], [], []>} : vector<8x8xf32>, vector<8x32xf32>, vector<8x32xf32> -> vector<8x32xf32>
    %c64_38 = arith.constant 64 : index
    %c0_39 = arith.constant 0 : index
    %66 = vector.load %arg3[%c64_38, %c0_39] : memref<128x128xf32, #tpu.memory_space<vmem>>, vector<32x128xf32>
    %cst_40 = arith.constant dense<0.000000e+00> : vector<8x128xf32>
    %67 = tpu.matmul %65, %66, %cst_40 {dimension_numbers = #tpu.dot_dimension_numbers<[1], [0], [0], [1], [0, 0, 1, 1], [], []>} : vector<8x32xf32>, vector<32x128xf32>, vector<8x128xf32> -> vector<8x128xf32>
    %68 = arith.addf %48, %67 : vector<8x128xf32>
    %c0_41 = arith.constant 0 : index
    %c96 = arith.constant 96 : index
    %69 = vector.load %arg6[%c0_41, %c96] : memref<8x384xf32, #tpu.memory_space<vmem>>, vector<8x32xf32>
    %c0_42 = arith.constant 0 : index
    %c224 = arith.constant 224 : index
    %70 = vector.load %arg6[%c0_42, %c224] : memref<8x384xf32, #tpu.memory_space<vmem>>, vector<8x32xf32>
    %c0_43 = arith.constant 0 : index
    %c352 = arith.constant 352 : index
    %71 = vector.load %arg6[%c0_43, %c352] : memref<8x384xf32, #tpu.memory_space<vmem>>, vector<8x32xf32>
    %cst_44 = arith.constant dense<0.000000e+00> : vector<8x8xf32>
    %72 = tpu.matmul %69, %70, %cst_44 {dimension_numbers = #tpu.dot_dimension_numbers<[1], [1], [0], [0], [0, 0, 1, 0], [], []>} : vector<8x32xf32>, vector<8x32xf32>, vector<8x8xf32> -> vector<8x8xf32>
    %cst_45 = arith.constant -1.000000e+30 : f32
    %73 = vector.broadcast %cst_45 : f32 to vector<8x8xf32>
    %74 = arith.select %7, %72, %73 : vector<8x8xi1>, vector<8x8xf32>
    %cst_46 = arith.constant dense<0xFF800000> : vector<8xf32>
    %75 = vector.multi_reduction <maximumf>, %74, %cst_46 [1] : vector<8x8xf32> to vector<8xf32>
    %76 = vector.shape_cast %75 : vector<8xf32> to vector<8x1xf32>
    %77 = vector.broadcast %76 : vector<8x1xf32> to vector<8x8xf32>
    %78 = arith.subf %74, %77 : vector<8x8xf32>
    %79 = math.exp %78 : vector<8x8xf32>
    %cst_47 = arith.constant dense<0.000000e+00> : vector<8xf32>
    %80 = vector.multi_reduction <add>, %79, %cst_47 [1] : vector<8x8xf32> to vector<8xf32>
    %81 = vector.shape_cast %80 : vector<8xf32> to vector<8x1xf32>
    %82 = tpu.reciprocal %81 : vector<8x1xf32> -> vector<8x1xf32>
    %83 = vector.broadcast %82 : vector<8x1xf32> to vector<8x8xf32>
    %84 = arith.mulf %79, %83 : vector<8x8xf32>
    %cst_48 = arith.constant dense<0.000000e+00> : vector<8x32xf32>
    %85 = tpu.matmul %84, %71, %cst_48 {dimension_numbers = #tpu.dot_dimension_numbers<[1], [0], [0], [1], [0, 0, 1, 1], [], []>} : vector<8x8xf32>, vector<8x32xf32>, vector<8x32xf32> -> vector<8x32xf32>
    %c96_49 = arith.constant 96 : index
    %c0_50 = arith.constant 0 : index
    %86 = vector.load %arg3[%c96_49, %c0_50] : memref<128x128xf32, #tpu.memory_space<vmem>>, vector<32x128xf32>
    %cst_51 = arith.constant dense<0.000000e+00> : vector<8x128xf32>
    %87 = tpu.matmul %85, %86, %cst_51 {dimension_numbers = #tpu.dot_dimension_numbers<[1], [0], [0], [1], [0, 0, 1, 1], [], []>} : vector<8x32xf32>, vector<32x128xf32>, vector<8x128xf32> -> vector<8x128xf32>
    %88 = arith.addf %68, %87 : vector<8x128xf32>
    %c0_52 = arith.constant 0 : index
    %c0_53 = arith.constant 0 : index
    %89 = vector.load %arg4[%c0_52, %c0_53] : memref<1x128xf32, #tpu.memory_space<vmem>>, vector<1x128xf32>
    %90 = vector.broadcast %89 : vector<1x128xf32> to vector<8x128xf32>
    %91 = arith.addf %88, %90 : vector<8x128xf32>
    %c0_54 = arith.constant 0 : index
    %c0_55 = arith.constant 0 : index
    %c0_56 = arith.constant 0 : index
    %92 = vector.load %arg5[%c0_54, %c0_55, %c0_56] : memref<1x8x128xf32, #tpu.memory_space<vmem>>, vector<1x8x128xf32>
    %93 = vector.shape_cast %92 : vector<1x8x128xf32> to vector<8x128xf32>
    %94 = vector.shape_cast %91 : vector<8x128xf32> to vector<1x8x128xf32>
    tpu.vector_store %arg5[%c0_54, %c0_55, %c0_56], %94 {strides = array<i32>} : memref<1x8x128xf32, #tpu.memory_space<vmem>>, vector<1x8x128xf32>,
    return
  }
  func.func @transform_0(%arg0: i32) -> (i32, i32, i32) {
    %c0_i32 = arith.constant 0 : i32
    %c0_i32_0 = arith.constant 0 : i32
    %c0_i32_1 = arith.constant 0 : i32
    return %arg0, %c0_i32, %c0_i32_0 : i32, i32, i32
  }
  func.func @transform_1(%arg0: i32) -> (i32, i32) {
    %c0_i32 = arith.constant 0 : i32
    %c0_i32_0 = arith.constant 0 : i32
    %c0_i32_1 = arith.constant 0 : i32
    return %c0_i32, %c0_i32_0 : i32, i32
  }
  func.func @transform_2(%arg0: i32) -> (i32, i32) {
    %c0_i32 = arith.constant 0 : i32
    %c0_i32_0 = arith.constant 0 : i32
    %c0_i32_1 = arith.constant 0 : i32
    return %c0_i32, %c0_i32_0 : i32, i32
  }
  func.func @transform_3(%arg0: i32) -> (i32, i32) {
    %c0_i32 = arith.constant 0 : i32
    %c0_i32_0 = arith.constant 0 : i32
    %c0_i32_1 = arith.constant 0 : i32
    return %c0_i32, %c0_i32_0 : i32, i32
  }
  func.func @transform_4(%arg0: i32) -> (i32, i32, i32) {
    %c0_i32 = arith.constant 0 : i32
    %c0_i32_0 = arith.constant 0 : i32
    %c0_i32_1 = arith.constant 0 : i32
    return %arg0, %c0_i32, %c0_i32_0 : i32, i32, i32
  }
}

</mosaic_0001>

<llo_original>
// kernel: tpu_custom_call.1
$region0: #{tpu_custom_call.1}
  #allocation0 [shape = 'u32[]', space=smem, size = 0x4, offset = 0x4, fixed_abs, tag = 'smem constant byte address 0x4 - core index']
  #allocation1 [shape = 'u32[144,128]{1,0:T(1,128)}', space=vmem, size = 0x12000, scoped, tag = 'internal scratch']
  #allocation2 [shape = 'f32[8,384]{1,0:T(8,128)}', space=vmem, size = 0x3000, scoped, tag = 'scratch operand']
  %s0 = inlined_call_operand.hbm [shape: f32[2,8,128], index: 0, kind: input, shape index: {}]
  %s1 = inlined_call_operand.hbm [shape: f32[128,384], index: 1, kind: input, shape index: {}]
  %s2 = inlined_call_operand.hbm [shape: f32[128,128], index: 2, kind: input, shape index: {}]
  %s3 = inlined_call_operand.vmem [shape: f32[1,128], index: 3, kind: input, shape index: {}]
  %s4 = inlined_call_operand.hbm [shape: f32[2,8,128], index: 4, kind: output, shape index: {}]
  %s5 = sld [smem:[#allocation0]]
  $region61: #{tpu_custom_call.1} parent=0
    _
  %s7 = ssub.s32 1, %s5
  %s8 = scalar_select 0, %s7, %s5
  $region1: #{tpu_custom_call.1} parent=0
    #allocation3 [shape = 'u8[8192]{0}', space=vmem, size = 0x2000, scoped, tag = 'input window, operand 0']
    #allocation4 [shape = 's32[2]{0}', space=sflag, size = 0x8, scoped, tag = 'scoped memory for tpu_custom_call.1']
    #allocation5 [shape = 's32[2]{0}', space=sflag, size = 0x8, scoped, tag = 'scoped memory for tpu_custom_call.1']
    #allocation6 [shape = 'u8[196608]{0}', space=vmem, size = 0x30000, scoped, tag = 'input window, operand 1, single buffered']
    #allocation7 [shape = 's32[1]{0}', space=sflag, size = 0x4, scoped, tag = 'scoped memory for tpu_custom_call.1']
    #allocation8 [shape = 'u8[65536]{0}', space=vmem, size = 0x10000, scoped, tag = 'input window, operand 2, single buffered']
    #allocation9 [shape = 'u8[8192]{0}', space=vmem, size = 0x2000, scoped, tag = 'output window, operand 0']
    %9 = vsyncpa [#allocation4], 0
    %s10 = scalar_lea.sflag [#allocation4], 1
    %11 = vsyncpa %s10, 0
    %12 = vsyncpa [#allocation7], 0
    %13 = vsyncpa [#allocation5], 0
    %s14 = scalar_lea.sflag [#allocation5], 1
    %15 = vsyncpa %s14, 0
    loop: start=0, step=1, limit=4
    $region2: #{tpu_custom_call.1} parent=1 // loop_pre_header
      _
    $region3: #{tpu_custom_call.1} parent=1 // loop_header
      %s17 = sphi 0, %s21
      %p18 = scmp.ge.s32.totalorder %s17, 4
      %s27 = sphi 0, %s29
      %s30 = sphi 0, %s27
      %s31 = sphi 0, %s30
      %s47 = sphi 0, %s31
      %s51 = sphi 0, %s51
      %s53 = sphi 0, %s51
      %s54 = sphi 0, %s53
      %s68 = sphi 0, %s54
      %s72 = sphi 0, %s72
      %s74 = sphi 0, %s72
      %s75 = sphi 0, %s74
      %s89 = sphi 0, %s75
      %s93 = sphi 0, %s93
      %s95 = sphi 0, %s93
      %s96 = sphi 0, %s95
      %s110 = sphi 0, %s96
      %s116 = sphi 0, %s118
      %s119 = sphi 0, %s116
      %s120 = sphi 0, %s119
      %s136 = sphi 0, %s120
    $region4: #{tpu_custom_call.1} parent=1 // loop_header_branch
      %20 = sbr.rel (%p18) target = $region8
    $region5: #{tpu_custom_call.1} parent=1 // loop_body
      %s22 = ssub.s32 %s17, 1
      %s23 = ssub.s32 %s17, 2
      %s24 = sadd.s32 %s17, 1
      %s25 = ssub.s32 %s17, %s24
      %p26 = scmp.eq.s32.totalorder %s25, 0
      %s28 = sadd.s32 %s27, 1
      %s29 = scalar_select %p26, %s27, %s28
      %p32 = pneg %p26
      %p33 = scmp.eq.s32.totalorder %s17, 1
      %p34 = por %p32, %p33
      %p35 = scmp.ne.s32.totalorder %s27, %s30
      %p36 = scmp.eq.s32.totalorder %s17, 0
      %p37 = por %p35, %p36
      %p38 = scmp.ne.s32.totalorder %s27, %s30
      %p39 = scmp.eq.s32.totalorder %s22, 1
      %p40 = por %p38, %p39
      %p41 = scmp.ne.s32.totalorder %s30, %s31
      %p42 = scmp.eq.s32.totalorder %s22, 0
      %p43 = por %p41, %p42
      %p44 = scmp.ne.s32.totalorder %s30, %s31
      %p45 = scmp.eq.s32.totalorder %s23, 1
      %p46 = por %p44, %p45
      %p48 = scmp.ne.s32.totalorder %s31, %s47
      %p49 = scmp.eq.s32.totalorder %s23, 0
      %p50 = por %p48, %p49
      %s52 = sadd.s32 %s51, 1
      %p55 = scmp.eq.s32.totalorder %s17, 1
      %p56 = scmp.ne.s32.totalorder %s51, %s53
      %p57 = scmp.eq.s32.totalorder %s17, 0
      %p58 = por %p56, %p57
      %p59 = scmp.ne.s32.totalorder %s51, %s53
      %p60 = scmp.eq.s32.totalorder %s22, 1
      %p61 = por %p59, %p60
      %p62 = scmp.ne.s32.totalorder %s53, %s54
      %p63 = scmp.eq.s32.totalorder %s22, 0
      %p64 = por %p62, %p63
      %p65 = scmp.ne.s32.totalorder %s53, %s54
      %p66 = scmp.eq.s32.totalorder %s23, 1
      %p67 = por %p65, %p66
      %p69 = scmp.ne.s32.totalorder %s54, %s68
      %p70 = scmp.eq.s32.totalorder %s23, 0
      %p71 = por %p69, %p70
      %s73 = sadd.s32 %s72, 1
      %p76 = scmp.eq.s32.totalorder %s17, 1
      %p77 = scmp.ne.s32.totalorder %s72, %s74
      %p78 = scmp.eq.s32.totalorder %s17, 0
      %p79 = por %p77, %p78
      %p80 = scmp.ne.s32.totalorder %s72, %s74
      %p81 = scmp.eq.s32.totalorder %s22, 1
      %p82 = por %p80, %p81
      %p83 = scmp.ne.s32.totalorder %s74, %s75
      %p84 = scmp.eq.s32.totalorder %s22, 0
      %p85 = por %p83, %p84
      %p86 = scmp.ne.s32.totalorder %s74, %s75
      %p87 = scmp.eq.s32.totalorder %s23, 1
      %p88 = por %p86, %p87
      %p90 = scmp.ne.s32.totalorder %s75, %s89
      %p91 = scmp.eq.s32.totalorder %s23, 0
      %p92 = por %p90, %p91
      %s94 = sadd.s32 %s93, 1
      %p97 = scmp.eq.s32.totalorder %s17, 1
      %p98 = scmp.ne.s32.totalorder %s93, %s95
      %p99 = scmp.eq.s32.totalorder %s17, 0
      %p100 = por %p98, %p99
      %p101 = scmp.ne.s32.totalorder %s93, %s95
      %p102 = scmp.eq.s32.totalorder %s22, 1
      %p103 = por %p101, %p102
      %p104 = scmp.ne.s32.totalorder %s95, %s96
      %p105 = scmp.eq.s32.totalorder %s22, 0
      %p106 = por %p104, %p105
      %p107 = scmp.ne.s32.totalorder %s95, %s96
      %p108 = scmp.eq.s32.totalorder %s23, 1
      %p109 = por %p107, %p108
      %p111 = scmp.ne.s32.totalorder %s96, %s110
      %p112 = scmp.eq.s32.totalorder %s23, 0
      %p113 = por %p111, %p112
      %s114 = ssub.s32 %s17, %s24
      %p115 = scmp.eq.s32.totalorder %s114, 0
      %s117 = sadd.s32 %s116, 1
      %s118 = scalar_select %p115, %s116, %s117
      %p121 = pneg %p115
      %p122 = scmp.eq.s32.totalorder %s17, 1
      %p123 = por %p121, %p122
      %p124 = scmp.ne.s32.totalorder %s116, %s119
      %p125 = scmp.eq.s32.totalorder %s17, 0
      %p126 = por %p124, %p125
      %p127 = scmp.ne.s32.totalorder %s116, %s119
      %p128 = scmp.eq.s32.totalorder %s22, 1
      %p129 = por %p127, %p128
      %p130 = scmp.ne.s32.totalorder %s119, %s120
      %p131 = scmp.eq.s32.totalorder %s22, 0
      %p132 = por %p130, %p131
      %p133 = scmp.ne.s32.totalorder %s119, %s120
      %p134 = scmp.eq.s32.totalorder %s23, 1
      %p135 = por %p133, %p134
      %p137 = scmp.ne.s32.totalorder %s120, %s136
      %p138 = scmp.eq.s32.totalorder %s23, 0
      %p139 = por %p137, %p138
      %p140 = scmp.le.s32.totalorder 1, %s17
      %p141 = scmp.lt.s32.totalorder %s17, 3
      %p142 = pnand %p140, %p141
      %p143 = pneg %p142
      // Predicated region
      $region9: #{tpu_custom_call.1} parent=5 // pred_check
        _
      $region10: #{tpu_custom_call.1} parent=5 // pred_check_branch
        %145 = sbr.rel (%p142) target = $region12
      $region11: #{tpu_custom_call.1} parent=5 // pred_region
        %s146 = ssub.s32 %s17, 1
        // Predicated region
        $region13: #{tpu_custom_call.1} parent=11 // pred_check
          %p147 = pneg %p64
        $region14: #{tpu_custom_call.1} parent=11 // pred_check_branch
          %149 = sbr.rel (%p147) target = $region16
        $region15: #{tpu_custom_call.1} parent=11 // pred_region
          %s151 = ssub.s32 6144, 6144
          %152 = vsyncadd [#allocation7], %s151
          %s153 = sshll.u32 [#allocation6], 4
          %s154 = int_to_ptr.vmem [resolvable:$true] %s153
          %159 = dma.hbm_to_vmem [thread:$0]  %s1, 6144, %s154, [#allocation7], 384, 384, 24
        $region16: #{tpu_custom_call.1} parent=11 // pred_fallthru
          _
        // Predicated region
        $region17: #{tpu_custom_call.1} parent=11 // pred_check
          %p160 = pneg %p85
        $region18: #{tpu_custom_call.1} parent=11 // pred_check_branch
          %162 = sbr.rel (%p160) target = $region20
        $region19: #{tpu_custom_call.1} parent=11 // pred_region
          %s164 = ssub.s32 2048, 2048
          %165 = vsyncadd [#allocation7], %s164
          %s166 = sshll.u32 [#allocation8], 4
          %s167 = int_to_ptr.vmem [resolvable:$true] %s166
          %172 = dma.hbm_to_vmem [thread:$0]  %s2, 2048, %s167, [#allocation7], 128, 128, 8
        $region20: #{tpu_custom_call.1} parent=11 // pred_fallthru
          _
        // Predicated region
        $region21: #{tpu_custom_call.1} parent=11 // pred_check
          %p173 = pneg %p106
        $region22: #{tpu_custom_call.1} parent=11 // pred_check_branch
          %175 = sbr.rel (%p173) target = $region24
        $region23: #{tpu_custom_call.1} parent=11 // pred_region
          _
        $region24: #{tpu_custom_call.1} parent=11 // pred_fallthru
          _
      $region12: #{tpu_custom_call.1} parent=5 // pred_fallthru
        _
      %p176 = scmp.lt.s32.totalorder %s17, 2
      // Predicated region
      $region25: #{tpu_custom_call.1} parent=5 // pred_check
        %p177 = pneg %p176
      $region26: #{tpu_custom_call.1} parent=5 // pred_check_branch
        %179 = sbr.rel (%p177) target = $region28
      $region27: #{tpu_custom_call.1} parent=5 // pred_region
        // Predicated region
        $region29: #{tpu_custom_call.1} parent=27 // pred_check
          %p180 = pneg %p37
        $region30: #{tpu_custom_call.1} parent=27 // pred_check_branch
          %182 = sbr.rel (%p180) target = $region32
        $region31: #{tpu_custom_call.1} parent=27 // pred_region
          %s183 = sand.u32 %s27, 1
          %s184 = scalar_lea.sflag [#allocation4], %s183
          %s185 = sand.u32 %s27, 1
          %s186 = smul.addr %s185, 8
          %s187 = scalar_lea.vmem [#allocation3], %s186
          %s189 = ssub.s32 128, 128
          %190 = vsyncadd %s184, %s189
          %s191 = smul.addr %s17, 128
          %s192 = scalar_lea.hbm %s0, %s191
          %s194 = sshll.u32 %s187, 4
          %s195 = int_to_ptr.vmem [resolvable:$true] %s194
          %197 = dma.hbm_to_vmem [thread:$0]  %s192, 128, %s195, %s184
        $region32: #{tpu_custom_call.1} parent=27 // pred_fallthru
          _
      $region28: #{tpu_custom_call.1} parent=5 // pred_fallthru
        _
      %p198 = scmp.le.s32.totalorder 1, %s17
      %p199 = scmp.lt.s32.totalorder %s17, 3
      %p200 = pnand %p198, %p199
      %p201 = pneg %p200
      // Predicated region
      $region33: #{tpu_custom_call.1} parent=5 // pred_check
        _
      $region34: #{tpu_custom_call.1} parent=5 // pred_check_branch
        %203 = sbr.rel (%p200) target = $region36
      $region35: #{tpu_custom_call.1} parent=5 // pred_region
        %s204 = ssub.s32 %s17, 1
        %s205 = sand.u32 %s30, 1
        %s206 = scalar_lea.sflag [#allocation4], %s205
        %s207 = sand.u32 %s30, 1
        %s208 = smul.addr %s207, 8
        %s209 = scalar_lea.vmem [#allocation3], %s208
        // Predicated region
        $region37: #{tpu_custom_call.1} parent=35 // pred_check
          %p210 = pneg %p43
        $region38: #{tpu_custom_call.1} parent=35 // pred_check_branch
          %212 = sbr.rel (%p210) target = $region40
        $region39: #{tpu_custom_call.1} parent=35 // pred_region
          %213 = dma.done %s206, 128
        $region40: #{tpu_custom_call.1} parent=35 // pred_fallthru
          _
        // Predicated region
        $region41: #{tpu_custom_call.1} parent=35 // pred_check
          %p214 = pneg %p64
        $region42: #{tpu_custom_call.1} parent=35 // pred_check_branch
          %216 = sbr.rel (%p214) target = $region44
        $region43: #{tpu_custom_call.1} parent=35 // pred_region
          %217 = dma.done [#allocation7], 6144
        $region44: #{tpu_custom_call.1} parent=35 // pred_fallthru
          _
        // Predicated region
        $region45: #{tpu_custom_call.1} parent=35 // pred_check
          %p218 = pneg %p85
        $region46: #{tpu_custom_call.1} parent=35 // pred_check_branch
          %220 = sbr.rel (%p218) target = $region48
        $region47: #{tpu_custom_call.1} parent=35 // pred_region
          %221 = dma.done [#allocation7], 2048
        $region48: #{tpu_custom_call.1} parent=35 // pred_fallthru
          _
        %s222 = sand.u32 %s30, 1
        %s223 = scalar_lea.sflag [#allocation4], %s222
        %s224 = sand.u32 %s30, 1
        %s225 = smul.addr %s224, 8
        %s226 = scalar_lea.vmem [#allocation3], %s225
        %p227 = pneg %p43
        %p228 = pneg %p40
        %p229 = pneg %p64
        %p230 = pneg %p61
        %p231 = pneg %p85
        %p232 = pneg %p82
        %p233 = pneg %p106
        %p234 = pneg %p103
        %p235 = pneg %p132
        %p236 = pneg %p129
        %s237 = sand.u32 %s119, 1
        %s238 = scalar_lea.sflag [#allocation5], %s237
        %s239 = sand.u32 %s119, 1
        %s240 = smul.addr %s239, 8
        %s241 = scalar_lea.vmem [#allocation9], %s240
        %v242 = vld [vmem:[%s209] sm:$0xff]
        %v243 = vld [vmem:[#allocation6] sm:$0xff]
        %v244 = vld [vmem:[#allocation6 + $0x8] sm:$0xff]
        %v245 = vld [vmem:[#allocation6 + $0x10] sm:$0xff]
        %v246 = vld [vmem:[#allocation6 + $0x18] sm:$0xff]
        %v247 = vld [vmem:[#allocation6 + $0x20] sm:$0xff]
        %v248 = vld [vmem:[#allocation6 + $0x28] sm:$0xff]
        %v249 = vld [vmem:[#allocation6 + $0x30] sm:$0xff]
        %v250 = vld [vmem:[#allocation6 + $0x38] sm:$0xff]
        %v251 = vld [vmem:[#allocation6 + $0x40] sm:$0xff]
        %v252 = vld [vmem:[#allocation6 + $0x48] sm:$0xff]
        %v253 = vld [vmem:[#allocation6 + $0x50] sm:$0xff]
        %v254 = vld [vmem:[#allocation6 + $0x58] sm:$0xff]
        %v255 = vld [vmem:[#allocation6 + $0x60] sm:$0xff]
        %v256 = vld [vmem:[#allocation6 + $0x68] sm:$0xff]
        %v257 = vld [vmem:[#allocation6 + $0x70] sm:$0xff]
        %v258 = vld [vmem:[#allocation6 + $0x78] sm:$0xff]
        %v259 = vld [vmem:[#allocation6 + $0x80] sm:$0xff]
        %v260 = vld [vmem:[#allocation6 + $0x88] sm:$0xff]
        %v261 = vld [vmem:[#allocation6 + $0x90] sm:$0xff]
        %v262 = vld [vmem:[#allocation6 + $0x98] sm:$0xff]
        %v263 = vld [vmem:[#allocation6 + $0xa0] sm:$0xff]
        %v264 = vld [vmem:[#allocation6 + $0xa8] sm:$0xff]
        %v265 = vld [vmem:[#allocation6 + $0xb0] sm:$0xff]
        %v266 = vld [vmem:[#allocation6 + $0xb8] sm:$0xff]
        %v267 = vld [vmem:[#allocation6 + $0xc0] sm:$0xff]
        %v268 = vld [vmem:[#allocation6 + $0xc8] sm:$0xff]
        %v269 = vld [vmem:[#allocation6 + $0xd0] sm:$0xff]
        %v270 = vld [vmem:[#allocation6 + $0xd8] sm:$0xff]
        %v271 = vld [vmem:[#allocation6 + $0xe0] sm:$0xff]
        %v272 = vld [vmem:[#allocation6 + $0xe8] sm:$0xff]
        %v273 = vld [vmem:[#allocation6 + $0xf0] sm:$0xff]
        %v274 = vld [vmem:[#allocation6 + $0xf8] sm:$0xff]
        %v275 = vld [vmem:[#allocation6 + $0x100] sm:$0xff]
        %v276 = vld [vmem:[#allocation6 + $0x108] sm:$0xff]
        %v277 = vld [vmem:[#allocation6 + $0x110] sm:$0xff]
        %v278 = vld [vmem:[#allocation6 + $0x118] sm:$0xff]
        %v279 = vld [vmem:[#allocation6 + $0x120] sm:$0xff]
        %v280 = vld [vmem:[#allocation6 + $0x128] sm:$0xff]
        %v281 = vld [vmem:[#allocation6 + $0x130] sm:$0xff]
        %v282 = vld [vmem:[#allocation6 + $0x138] sm:$0xff]
        %v283 = vld [vmem:[#allocation6 + $0x140] sm:$0xff]
        %v284 = vld [vmem:[#allocation6 + $0x148] sm:$0xff]
        %v285 = vld [vmem:[#allocation6 + $0x150] sm:$0xff]
        %v286 = vld [vmem:[#allocation6 + $0x158] sm:$0xff]
        %v287 = vld [vmem:[#allocation6 + $0x160] sm:$0xff]
        %v288 = vld [vmem:[#allocation6 + $0x168] sm:$0xff]
        %v289 = vld [vmem:[#allocation6 + $0x170] sm:$0xff]
        %v290 = vld [vmem:[#allocation6 + $0x178] sm:$0xff]
        %291 = vmatprep.subr.mxu0 %v244
        %292 = vmatpush1.msra.mxu0 %v243
        %293 = vmatprep.subr.mxu0 %v247
        %294 = vmatpush1.msra.mxu0 %v246
        %295 = vmatprep.subr.mxu0 %v250
        %296 = vmatpush1.msra.mxu0 %v249
        %297 = vmatprep.subr.mxu0 %v253
        %298 = vmatpush1.msra.mxu0 %v252
        %299 = vmatprep.subr.mxu0 %v256
        %300 = vmatpush1.msra.mxu0 %v255
        %301 = vmatprep.subr.mxu0 %v259
        %302 = vmatpush1.msra.mxu0 %v258
        %303 = vmatprep.subr.mxu0 %v262
        %304 = vmatpush1.msra.mxu0 %v261
        %305 = vmatprep.subr.mxu0 %v265
        %306 = vmatpush1.msra.mxu0 %v264
        %307 = vmatprep.subr.mxu0 %v268
        %308 = vmatpush1.msra.mxu0 %v267
        %309 = vmatprep.subr.mxu0 %v271
        %310 = vmatpush1.msra.mxu0 %v270
        %311 = vmatprep.subr.mxu0 %v274
        %312 = vmatpush1.msra.mxu0 %v273
        %313 = vmatprep.subr.mxu0 %v277
        %314 = vmatpush1.msra.mxu0 %v276
        %315 = vmatprep.subr.mxu0 %v280
        %316 = vmatpush1.msra.mxu0 %v279
        %317 = vmatprep.subr.mxu0 %v283
        %318 = vmatpush1.msra.mxu0 %v282
        %319 = vmatprep.subr.mxu0 %v286
        %320 = vmatpush1.msra.mxu0 %v285
        %321 = vmatprep.subr.mxu0 %v289
        %322 = vmatpush1.msra.mxu0 %v288
        %323 = vmatprep.subr.mxu0 0.0
        %324 = vmatpush1.msra.mxu0 0.0
        %325 = vmatprep.subr.mxu0 0.0
        %326 = vmatpush1.msra.mxu0 0.0
        %327 = vmatprep.subr.mxu0 0.0
        %328 = vmatpush1.msra.mxu0 0.0
        %329 = vmatprep.subr.mxu0 0.0
        %330 = vmatpush1.msra.mxu0 0.0
        %331 = vmatprep.subr.mxu0 0.0
        %332 = vmatpush1.msra.mxu0 0.0
        %333 = vmatprep.subr.mxu0 0.0
        %334 = vmatpush1.msra.mxu0 0.0
        %335 = vmatprep.subr.mxu0 0.0
        %336 = vmatpush1.msra.mxu0 0.0
        %337 = vmatprep.subr.mxu0 0.0
        %338 = vmatpush1.msra.mxu0 0.0
        %339 = vmatprep.subr.mxu0 0.0
        %340 = vmatpush1.msra.mxu0 0.0
        %341 = vmatprep.subr.mxu0 0.0
        %342 = vmatpush1.msra.mxu0 0.0
        %343 = vmatprep.subr.mxu0 0.0
        %344 = vmatpush1.msra.mxu0 0.0
        %345 = vmatprep.subr.mxu0 0.0
        %346 = vmatpush1.msra.mxu0 0.0
        %347 = vmatprep.subr.mxu0 0.0
        %348 = vmatpush1.msra.mxu0 0.0
        %349 = vmatprep.subr.mxu0 0.0
        %350 = vmatpush1.msra.mxu0 0.0
        %351 = vmatprep.subr.mxu0 0.0
        %352 = vmatpush1.msra.mxu0 0.0
        %353 = vmatprep.subr.mxu0 0.0
        %354 = vmatpush1.msra.mxu0 0.0
        %355 = vmatprep.mubr.f32.mxu0 0.0
        %356 = vmatmul.mubr.f32.gmra.mrb[0].mxu0 %v242
        %v357 = vpop.f32.mrb[0].mxu0
        %v358 = vadd.f32 0.0, %v357
        %v359 = vpop.f32.mrb[0].mxu0
        %v360 = vadd.f32 0.0, %v359
        %361 = vdwg.mxu0
        %362 = vmatprep.subr.mxu0 0.0
        %363 = vmatpush1.msra.mxu0 %v245
        %364 = vmatprep.subr.mxu0 0.0
        %365 = vmatpush1.msra.mxu0 %v248
        %366 = vmatprep.subr.mxu0 0.0
        %367 = vmatpush1.msra.mxu0 %v251
        %368 = vmatprep.subr.mxu0 0.0
        %369 = vmatpush1.msra.mxu0 %v254
        %370 = vmatprep.subr.mxu0 0.0
        %371 = vmatpush1.msra.mxu0 %v257
        %372 = vmatprep.subr.mxu0 0.0
        %373 = vmatpush1.msra.mxu0 %v260
        %374 = vmatprep.subr.mxu0 0.0
        %375 = vmatpush1.msra.mxu0 %v263
        %376 = vmatprep.subr.mxu0 0.0
        %377 = vmatpush1.msra.mxu0 %v266
        %378 = vmatprep.subr.mxu0 0.0
        %379 = vmatpush1.msra.mxu0 %v269
        %380 = vmatprep.subr.mxu0 0.0
        %381 = vmatpush1.msra.mxu0 %v272
        %382 = vmatprep.subr.mxu0 0.0
        %383 = vmatpush1.msra.mxu0 %v275
        %384 = vmatprep.subr.mxu0 0.0
        %385 = vmatpush1.msra.mxu0 %v278
        %386 = vmatprep.subr.mxu0 0.0
        %387 = vmatpush1.msra.mxu0 %v281
        %388 = vmatprep.subr.mxu0 0.0
        %389 = vmatpush1.msra.mxu0 %v284
        %390 = vmatprep.subr.mxu0 0.0
        %391 = vmatpush1.msra.mxu0 %v287
        %392 = vmatprep.subr.mxu0 0.0
        %393 = vmatpush1.msra.mxu0 %v290
        %394 = vmatprep.subr.mxu0 0.0
        %395 = vmatpush1.msra.mxu0 0.0
        %396 = vmatprep.subr.mxu0 0.0
        %397 = vmatpush1.msra.mxu0 0.0
        %398 = vmatprep.subr.mxu0 0.0
        %399 = vmatpush1.msra.mxu0 0.0
        %400 = vmatprep.subr.mxu0 0.0
        %401 = vmatpush1.msra.mxu0 0.0
        %402 = vmatprep.subr.mxu0 0.0
        %403 = vmatpush1.msra.mxu0 0.0
        %404 = vmatprep.subr.mxu0 0.0
        %405 = vmatpush1.msra.mxu0 0.0
        %406 = vmatprep.subr.mxu0 0.0
        %407 = vmatpush1.msra.mxu0 0.0
        %408 = vmatprep.subr.mxu0 0.0
        %409 = vmatpush1.msra.mxu0 0.0
        %410 = vmatprep.subr.mxu0 0.0
        %411 = vmatpush1.msra.mxu0 0.0
        %412 = vmatprep.subr.mxu0 0.0
        %413 = vmatpush1.msra.mxu0 0.0
        %414 = vmatprep.subr.mxu0 0.0
        %415 = vmatpush1.msra.mxu0 0.0
        %416 = vmatprep.subr.mxu0 0.0
        %417 = vmatpush1.msra.mxu0 0.0
        %418 = vmatprep.subr.mxu0 0.0
        %419 = vmatpush1.msra.mxu0 0.0
        %420 = vmatprep.subr.mxu0 0.0
        %421 = vmatpush1.msra.mxu0 0.0
        %422 = vmatprep.subr.mxu0 0.0
        %423 = vmatpush1.msra.mxu0 0.0
        %424 = vmatprep.subr.mxu0 0.0
        %425 = vmatpush1.msra.mxu0 0.0
        %426 = vmatprep.mubr.f32.mxu0 0.0
        %427 = vmatmul.mubr.f32.gmra.mrb[0].mxu0 %v242
        %v428 = vpop.f32.mrb[0].mxu0
        %v429 = vadd.f32 0.0, %v428
        %v430 = vpop.f32.mrb[0].mxu0
        %431 = vdwg.mxu0
        %432 = vst [vmem:[#allocation2] sm:$0xff] %v358
        %433 = vst [vmem:[#allocation2 + $0x8] sm:$0xff] %v360
        %434 = vst [vmem:[#allocation2 + $0x10] sm:$0xff] %v429
        %v435 = vlaneseq
        %v436 = vshrl.u32 %v435, 7
        %v437 = vlaneseq
        %v438 = vand.u32 %v437, 127
        %vm439 = vcmp.le.s32.totalorder %v438, %v436
        %v440 = vld [vmem:[#allocation2] sm:$0xff]
        %v441 = vld [vmem:[#allocation2 + $0x8] sm:$0xff]
        %v442 = vld [vmem:[#allocation2 + $0x10] sm:$0xff]
        %vm443 = vcmask 261120
        %v445 = vsel %vm443, %v440, 0
        %v448 = vsel %vm443, %v441, 0
        %450 = vmatprep.subr.mxu0 0.0
        %451 = vmatpush1.xpose.msra.mxu0 %v448
        %452 = vmatprep.subr.mxu0 0.0
        %453 = vmatpush1.xpose.msra.mxu0 0.0
        %454 = vmatprep.subr.mxu0 0.0
        %455 = vmatpush1.xpose.msra.mxu0 0.0
        %456 = vmatprep.subr.mxu0 0.0
        %457 = vmatpush1.xpose.msra.mxu0 0.0
        %458 = vmatprep.subr.mxu0 0.0
        %459 = vmatpush1.xpose.msra.mxu0 0.0
        %460 = vmatprep.subr.mxu0 0.0
        %461 = vmatpush1.xpose.msra.mxu0 0.0
        %462 = vmatprep.subr.mxu0 0.0
        %463 = vmatpush1.xpose.msra.mxu0 0.0
        %464 = vmatprep.subr.mxu0 0.0
        %465 = vmatpush1.xpose.msra.mxu0 0.0
        %466 = vmatprep.subr.mxu0 0.0
        %467 = vmatpush1.xpose.msra.mxu0 0.0
        %468 = vmatprep.subr.mxu0 0.0
        %469 = vmatpush1.xpose.msra.mxu0 0.0
        %470 = vmatprep.subr.mxu0 0.0
        %471 = vmatpush1.xpose.msra.mxu0 0.0
        %472 = vmatprep.subr.mxu0 0.0
        %473 = vmatpush1.xpose.msra.mxu0 0.0
        %474 = vmatprep.subr.mxu0 0.0
        %475 = vmatpush1.xpose.msra.mxu0 0.0
        %476 = vmatprep.subr.mxu0 0.0
        %477 = vmatpush1.xpose.msra.mxu0 0.0
        %478 = vmatprep.subr.mxu0 0.0
        %479 = vmatpush1.xpose.msra.mxu0 0.0
        %480 = vmatprep.subr.mxu0 0.0
        %481 = vmatpush1.xpose.msra.mxu0 0.0
        %482 = vmatprep.subr.mxu0 0.0
        %483 = vmatpush1.xpose.msra.mxu0 0.0
        %484 = vmatprep.subr.mxu0 0.0
        %485 = vmatpush1.xpose.msra.mxu0 0.0
        %486 = vmatprep.subr.mxu0 0.0
        %487 = vmatpush1.xpose.msra.mxu0 0.0
        %488 = vmatprep.subr.mxu0 0.0
        %489 = vmatpush1.xpose.msra.mxu0 0.0
        %490 = vmatprep.subr.mxu0 0.0
        %491 = vmatpush1.xpose.msra.mxu0 0.0
        %492 = vmatprep.subr.mxu0 0.0
        %493 = vmatpush1.xpose.msra.mxu0 0.0
        %494 = vmatprep.subr.mxu0 0.0
        %495 = vmatpush1.xpose.msra.mxu0 0.0
        %496 = vmatprep.subr.mxu0 0.0
        %497 = vmatpush1.xpose.msra.mxu0 0.0
        %498 = vmatprep.subr.mxu0 0.0
        %499 = vmatpush1.xpose.msra.mxu0 0.0
        %500 = vmatprep.subr.mxu0 0.0
        %501 = vmatpush1.xpose.msra.mxu0 0.0
        %502 = vmatprep.subr.mxu0 0.0
        %503 = vmatpush1.xpose.msra.mxu0 0.0
        %504 = vmatprep.subr.mxu0 0.0
        %505 = vmatpush1.xpose.msra.mxu0 0.0
        %506 = vmatprep.subr.mxu0 0.0
        %507 = vmatpush1.xpose.msra.mxu0 0.0
        %508 = vmatprep.subr.mxu0 0.0
        %509 = vmatpush1.xpose.msra.mxu0 0.0
        %510 = vmatprep.subr.mxu0 0.0
        %511 = vmatpush1.xpose.msra.mxu0 0.0
        %512 = vmatprep.subr.mxu0 0.0
        %513 = vmatpush1.xpose.msra.mxu0 0.0
        %514 = vmatprep.mubr.f32.mxu0 0.0
        %515 = vmatmul.mubr.f32.gmra.mrb[0].mxu0 %v445
        %v516 = vpop.f32.mrb[0].mxu0
        %v517 = vadd.f32 0.0, %v516
        %v518 = vpop.f32.mrb[0].mxu0
        %519 = vdwg.mxu0
        %v520 = vsel %vm439, %v517, -1e+30
        %vm521 = vcmask 64512
        %v522 = vsel %vm521, %v520, -inf
        %523 = vmax.xlane.f32.xlu0 %v522
        %v524 = vpop.xlane.xlu0 %523
        %v525 = vsub.f32 %v520, %v524
        %v526 = vmul.f32 %v525, 1.442695
        %v527 = vpow.pop %v526
        %v528 = vsel %vm521, %v527, 0.0
        %529 = vadd.xlane.f32.xlu0 %v528
        %v530 = vpop.xlane.xlu0 %529
        %v531 = vrcp.pop %v530
        %v532 = vmul.f32 %v527, %v531
        %v534 = vsel %vm521, %v532, 0
        %536 = vmatprep.subr.mxu0 0.0
        %537 = vmatpush1.msra.mxu0 %v442
        %538 = vmatprep.subr.mxu0 0.0
        %539 = vmatpush1.msra.mxu0 0.0
        %540 = vmatprep.subr.mxu0 0.0
        %541 = vmatpush1.msra.mxu0 0.0
        %542 = vmatprep.subr.mxu0 0.0
        %543 = vmatpush1.msra.mxu0 0.0
        %544 = vmatprep.subr.mxu0 0.0
        %545 = vmatpush1.msra.mxu0 0.0
        %546 = vmatprep.subr.mxu0 0.0
        %547 = vmatpush1.msra.mxu0 0.0
        %548 = vmatprep.subr.mxu0 0.0
        %549 = vmatpush1.msra.mxu0 0.0
        %550 = vmatprep.subr.mxu0 0.0
        %551 = vmatpush1.msra.mxu0 0.0
        %552 = vmatprep.subr.mxu0 0.0
        %553 = vmatpush1.msra.mxu0 0.0
        %554 = vmatprep.subr.mxu0 0.0
        %555 = vmatpush1.msra.mxu0 0.0
        %556 = vmatprep.subr.mxu0 0.0
        %557 = vmatpush1.msra.mxu0 0.0
        %558 = vmatprep.subr.mxu0 0.0
        %559 = vmatpush1.msra.mxu0 0.0
        %560 = vmatprep.subr.mxu0 0.0
        %561 = vmatpush1.msra.mxu0 0.0
        %562 = vmatprep.subr.mxu0 0.0
        %563 = vmatpush1.msra.mxu0 0.0
        %564 = vmatprep.subr.mxu0 0.0
        %565 = vmatpush1.msra.mxu0 0.0
        %566 = vmatprep.subr.mxu0 0.0
        %567 = vmatpush1.msra.mxu0 0.0
        %568 = vmatprep.subr.mxu0 0.0
        %569 = vmatpush1.msra.mxu0 0.0
        %570 = vmatprep.subr.mxu0 0.0
        %571 = vmatpush1.msra.mxu0 0.0
        %572 = vmatprep.subr.mxu0 0.0
        %573 = vmatpush1.msra.mxu0 0.0
        %574 = vmatprep.subr.mxu0 0.0
        %575 = vmatpush1.msra.mxu0 0.0
        %576 = vmatprep.subr.mxu0 0.0
        %577 = vmatpush1.msra.mxu0 0.0
        %578 = vmatprep.subr.mxu0 0.0
        %579 = vmatpush1.msra.mxu0 0.0
        %580 = vmatprep.subr.mxu0 0.0
        %581 = vmatpush1.msra.mxu0 0.0
        %582 = vmatprep.subr.mxu0 0.0
        %583 = vmatpush1.msra.mxu0 0.0
        %584 = vmatprep.subr.mxu0 0.0
        %585 = vmatpush1.msra.mxu0 0.0
        %586 = vmatprep.subr.mxu0 0.0
        %587 = vmatpush1.msra.mxu0 0.0
        %588 = vmatprep.subr.mxu0 0.0
        %589 = vmatpush1.msra.mxu0 0.0
        %590 = vmatprep.subr.mxu0 0.0
        %591 = vmatpush1.msra.mxu0 0.0
        %592 = vmatprep.subr.mxu0 0.0
        %593 = vmatpush1.msra.mxu0 0.0
        %594 = vmatprep.subr.mxu0 0.0
        %595 = vmatpush1.msra.mxu0 0.0
        %596 = vmatprep.subr.mxu0 0.0
        %597 = vmatpush1.msra.mxu0 0.0
        %598 = vmatprep.subr.mxu0 0.0
        %599 = vmatpush1.msra.mxu0 0.0
        %600 = vmatprep.mubr.f32.mxu0 0.0
        %601 = vmatmul.mubr.f32.gmra.mrb[0].mxu0 %v534
        %v602 = vpop.f32.mrb[0].mxu0
        %v603 = vadd.f32 0.0, %v602
        %v604 = vpop.f32.mrb[0].mxu0
        %605 = vdwg.mxu0
        %v606 = vld [vmem:[#allocation8] sm:$0xff]
        %v607 = vld [vmem:[#allocation8 + $0x8] sm:$0xff]
        %v608 = vld [vmem:[#allocation8 + $0x10] sm:$0xff]
        %v609 = vld [vmem:[#allocation8 + $0x18] sm:$0xff]
        %610 = vrot.lane.b32.xlu0 %v440, 96
        %v611 = vpop.permute.xlu0 %610
        %612 = vrot.lane.b32.xlu0 %v441, 96
        %v613 = vpop.permute.xlu0 %612
        %v614 = vsel %vm443, %v611, 0
        %v616 = vsel %vm443, %v613, 0
        %618 = vmatprep.subr.mxu0 0.0
        %619 = vmatpush1.xpose.msra.mxu0 %v616
        %620 = vmatprep.subr.mxu0 0.0
        %621 = vmatpush1.xpose.msra.mxu0 0.0
        %622 = vmatprep.subr.mxu0 0.0
        %623 = vmatpush1.xpose.msra.mxu0 0.0
        %624 = vmatprep.subr.mxu0 0.0
        %625 = vmatpush1.xpose.msra.mxu0 0.0
        %626 = vmatprep.subr.mxu0 0.0
        %627 = vmatpush1.xpose.msra.mxu0 0.0
        %628 = vmatprep.subr.mxu0 0.0
        %629 = vmatpush1.xpose.msra.mxu0 0.0
        %630 = vmatprep.subr.mxu0 0.0
        %631 = vmatpush1.xpose.msra.mxu0 0.0
        %632 = vmatprep.subr.mxu0 0.0
        %633 = vmatpush1.xpose.msra.mxu0 0.0
        %634 = vmatprep.subr.mxu0 0.0
        %635 = vmatpush1.xpose.msra.mxu0 0.0
        %636 = vmatprep.subr.mxu0 0.0
        %637 = vmatpush1.xpose.msra.mxu0 0.0
        %638 = vmatprep.subr.mxu0 0.0
        %639 = vmatpush1.xpose.msra.mxu0 0.0
        %640 = vmatprep.subr.mxu0 0.0
        %641 = vmatpush1.xpose.msra.mxu0 0.0
        %642 = vmatprep.subr.mxu0 0.0
        %643 = vmatpush1.xpose.msra.mxu0 0.0
        %644 = vmatprep.subr.mxu0 0.0
        %645 = vmatpush1.xpose.msra.mxu0 0.0
        %646 = vmatprep.subr.mxu0 0.0
        %647 = vmatpush1.xpose.msra.mxu0 0.0
        %648 = vmatprep.subr.mxu0 0.0
        %649 = vmatpush1.xpose.msra.mxu0 0.0
        %650 = vmatprep.subr.mxu0 0.0
        %651 = vmatpush1.xpose.msra.mxu0 0.0
        %652 = vmatprep.subr.mxu0 0.0
        %653 = vmatpush1.xpose.msra.mxu0 0.0
        %654 = vmatprep.subr.mxu0 0.0
        %655 = vmatpush1.xpose.msra.mxu0 0.0
        %656 = vmatprep.subr.mxu0 0.0
        %657 = vmatpush1.xpose.msra.mxu0 0.0
        %658 = vmatprep.subr.mxu0 0.0
        %659 = vmatpush1.xpose.msra.mxu0 0.0
        %660 = vmatprep.subr.mxu0 0.0
        %661 = vmatpush1.xpose.msra.mxu0 0.0
        %662 = vmatprep.subr.mxu0 0.0
        %663 = vmatpush1.xpose.msra.mxu0 0.0
        %664 = vmatprep.subr.mxu0 0.0
        %665 = vmatpush1.xpose.msra.mxu0 0.0
        %666 = vmatprep.subr.mxu0 0.0
        %667 = vmatpush1.xpose.msra.mxu0 0.0
        %668 = vmatprep.subr.mxu0 0.0
        %669 = vmatpush1.xpose.msra.mxu0 0.0
        %670 = vmatprep.subr.mxu0 0.0
        %671 = vmatpush1.xpose.msra.mxu0 0.0
        %672 = vmatprep.subr.mxu0 0.0
        %673 = vmatpush1.xpose.msra.mxu0 0.0
        %674 = vmatprep.subr.mxu0 0.0
        %675 = vmatpush1.xpose.msra.mxu0 0.0
        %676 = vmatprep.subr.mxu0 0.0
        %677 = vmatpush1.xpose.msra.mxu0 0.0
        %678 = vmatprep.subr.mxu0 0.0
        %679 = vmatpush1.xpose.msra.mxu0 0.0
        %680 = vmatprep.subr.mxu0 0.0
        %681 = vmatpush1.xpose.msra.mxu0 0.0
        %682 = vmatprep.mubr.f32.mxu0 0.0
        %683 = vmatmul.mubr.f32.gmra.mrb[0].mxu0 %v614
        %v684 = vpop.f32.mrb[0].mxu0
        %v685 = vadd.f32 0.0, %v684
        %v686 = vpop.f32.mrb[0].mxu0
        %687 = vdwg.mxu0
        %v688 = vsel %vm439, %v685, -1e+30
        %v689 = vsel %vm521, %v688, -inf
        %690 = vmax.xlane.f32.xlu0 %v689
        %v691 = vpop.xlane.xlu0 %690
        %v692 = vsub.f32 %v688, %v691
        %v693 = vmul.f32 %v692, 1.442695
        %v694 = vpow.pop %v693
        %v695 = vsel %vm521, %v694, 0.0
        %696 = vadd.xlane.f32.xlu0 %v695
        %v697 = vpop.xlane.xlu0 %696
        %v698 = vrcp.pop %v697
        %v699 = vmul.f32 %v694, %v698
        %701 = vrot.lane.b32.xlu0 %v442, 96
        %v702 = vpop.permute.xlu0 %701
        %v705 = vsel %vm521, %v699, 0
        %707 = vmatprep.subr.mxu0 0.0
        %708 = vmatpush1.msra.mxu0 %v702
        %709 = vmatprep.subr.mxu0 0.0
        %710 = vmatpush1.msra.mxu0 0.0
        %711 = vmatprep.subr.mxu0 0.0
        %712 = vmatpush1.msra.mxu0 0.0
        %713 = vmatprep.subr.mxu0 0.0
        %714 = vmatpush1.msra.mxu0 0.0
        %715 = vmatprep.subr.mxu0 0.0
        %716 = vmatpush1.msra.mxu0 0.0
        %717 = vmatprep.subr.mxu0 0.0
        %718 = vmatpush1.msra.mxu0 0.0
        %719 = vmatprep.subr.mxu0 0.0
        %720 = vmatpush1.msra.mxu0 0.0
        %721 = vmatprep.subr.mxu0 0.0
        %722 = vmatpush1.msra.mxu0 0.0
        %723 = vmatprep.subr.mxu0 0.0
        %724 = vmatpush1.msra.mxu0 0.0
        %725 = vmatprep.subr.mxu0 0.0
        %726 = vmatpush1.msra.mxu0 0.0
        %727 = vmatprep.subr.mxu0 0.0
        %728 = vmatpush1.msra.mxu0 0.0
        %729 = vmatprep.subr.mxu0 0.0
        %730 = vmatpush1.msra.mxu0 0.0
        %731 = vmatprep.subr.mxu0 0.0
        %732 = vmatpush1.msra.mxu0 0.0
        %733 = vmatprep.subr.mxu0 0.0
        %734 = vmatpush1.msra.mxu0 0.0
        %735 = vmatprep.subr.mxu0 0.0
        %736 = vmatpush1.msra.mxu0 0.0
        %737 = vmatprep.subr.mxu0 0.0
        %738 = vmatpush1.msra.mxu0 0.0
        %739 = vmatprep.subr.mxu0 0.0
        %740 = vmatpush1.msra.mxu0 0.0
        %741 = vmatprep.subr.mxu0 0.0
        %742 = vmatpush1.msra.mxu0 0.0
        %743 = vmatprep.subr.mxu0 0.0
        %744 = vmatpush1.msra.mxu0 0.0
        %745 = vmatprep.subr.mxu0 0.0
        %746 = vmatpush1.msra.mxu0 0.0
        %747 = vmatprep.subr.mxu0 0.0
        %748 = vmatpush1.msra.mxu0 0.0
        %749 = vmatprep.subr.mxu0 0.0
        %750 = vmatpush1.msra.mxu0 0.0
        %751 = vmatprep.subr.mxu0 0.0
        %752 = vmatpush1.msra.mxu0 0.0
        %753 = vmatprep.subr.mxu0 0.0
        %754 = vmatpush1.msra.mxu0 0.0
        %755 = vmatprep.subr.mxu0 0.0
        %756 = vmatpush1.msra.mxu0 0.0
        %757 = vmatprep.subr.mxu0 0.0
        %758 = vmatpush1.msra.mxu0 0.0
        %759 = vmatprep.subr.mxu0 0.0
        %760 = vmatpush1.msra.mxu0 0.0
        %761 = vmatprep.subr.mxu0 0.0
        %762 = vmatpush1.msra.mxu0 0.0
        %763 = vmatprep.subr.mxu0 0.0
        %764 = vmatpush1.msra.mxu0 0.0
        %765 = vmatprep.subr.mxu0 0.0
        %766 = vmatpush1.msra.mxu0 0.0
        %767 = vmatprep.subr.mxu0 0.0
        %768 = vmatpush1.msra.mxu0 0.0
        %769 = vmatprep.subr.mxu0 0.0
        %770 = vmatpush1.msra.mxu0 0.0
        %771 = vmatprep.mubr.f32.mxu0 0.0
        %772 = vmatmul.mubr.f32.gmra.mrb[0].mxu0 %v705
        %v773 = vpop.f32.mrb[0].mxu0
        %v774 = vadd.f32 0.0, %v773
        %v775 = vpop.f32.mrb[0].mxu0
        %776 = vdwg.mxu0
        %v777 = vld [vmem:[#allocation8 + $0x20] sm:$0xff]
        %v778 = vld [vmem:[#allocation8 + $0x28] sm:$0xff]
        %v779 = vld [vmem:[#allocation8 + $0x30] sm:$0xff]
        %v780 = vld [vmem:[#allocation8 + $0x38] sm:$0xff]
        %v782 = vsel %vm443, %v774, 0
        %784 = vmatprep.subr.mxu0 0.0
        %785 = vmatpush1.msra.mxu0 %v777
        %786 = vmatprep.subr.mxu0 0.0
        %787 = vmatpush1.msra.mxu0 %v778
        %788 = vmatprep.subr.mxu0 0.0
        %789 = vmatpush1.msra.mxu0 %v779
        %790 = vmatprep.subr.mxu0 0.0
        %791 = vmatpush1.msra.mxu0 %v780
        %792 = vmatprep.subr.mxu0 0.0
        %793 = vmatpush1.msra.mxu0 0.0
        %794 = vmatprep.subr.mxu0 0.0
        %795 = vmatpush1.msra.mxu0 0.0
        %796 = vmatprep.subr.mxu0 0.0
        %797 = vmatpush1.msra.mxu0 0.0
        %798 = vmatprep.subr.mxu0 0.0
        %799 = vmatpush1.msra.mxu0 0.0
        %800 = vmatprep.subr.mxu0 0.0
        %801 = vmatpush1.msra.mxu0 0.0
        %802 = vmatprep.subr.mxu0 0.0
        %803 = vmatpush1.msra.mxu0 0.0
        %804 = vmatprep.subr.mxu0 0.0
        %805 = vmatpush1.msra.mxu0 0.0
        %806 = vmatprep.subr.mxu0 0.0
        %807 = vmatpush1.msra.mxu0 0.0
        %808 = vmatprep.subr.mxu0 0.0
        %809 = vmatpush1.msra.mxu0 0.0
        %810 = vmatprep.subr.mxu0 0.0
        %811 = vmatpush1.msra.mxu0 0.0
        %812 = vmatprep.subr.mxu0 0.0
        %813 = vmatpush1.msra.mxu0 0.0
        %814 = vmatprep.subr.mxu0 0.0
        %815 = vmatpush1.msra.mxu0 0.0
        %816 = vmatprep.subr.mxu0 0.0
        %817 = vmatpush1.msra.mxu0 0.0
        %818 = vmatprep.subr.mxu0 0.0
        %819 = vmatpush1.msra.mxu0 0.0
        %820 = vmatprep.subr.mxu0 0.0
        %821 = vmatpush1.msra.mxu0 0.0
        %822 = vmatprep.subr.mxu0 0.0
        %823 = vmatpush1.msra.mxu0 0.0
        %824 = vmatprep.subr.mxu0 0.0
        %825 = vmatpush1.msra.mxu0 0.0
        %826 = vmatprep.subr.mxu0 0.0
        %827 = vmatpush1.msra.mxu0 0.0
        %828 = vmatprep.subr.mxu0 0.0
        %829 = vmatpush1.msra.mxu0 0.0
        %830 = vmatprep.subr.mxu0 0.0
        %831 = vmatpush1.msra.mxu0 0.0
        %832 = vmatprep.subr.mxu0 0.0
        %833 = vmatpush1.msra.mxu0 0.0
        %834 = vmatprep.subr.mxu0 0.0
        %835 = vmatpush1.msra.mxu0 0.0
        %836 = vmatprep.subr.mxu0 0.0
        %837 = vmatpush1.msra.mxu0 0.0
        %838 = vmatprep.subr.mxu0 0.0
        %839 = vmatpush1.msra.mxu0 0.0
        %840 = vmatprep.subr.mxu0 0.0
        %841 = vmatpush1.msra.mxu0 0.0
        %842 = vmatprep.subr.mxu0 0.0
        %843 = vmatpush1.msra.mxu0 0.0
        %844 = vmatprep.subr.mxu0 0.0
        %845 = vmatpush1.msra.mxu0 0.0
        %846 = vmatprep.subr.mxu0 0.0
        %847 = vmatpush1.msra.mxu0 0.0
        %848 = vmatprep.mubr.f32.mxu0 0.0
        %849 = vmatmul.mubr.f32.gmra.mrb[0].mxu0 %v782
        %v850 = vpop.f32.mrb[0].mxu0
        %v851 = vadd.f32 0.0, %v850
        %v852 = vpop.f32.mrb[0].mxu0
        %853 = vdwg.mxu0
        %v855 = vsel %vm443, %v603, 0
        %857 = vmatprep.subr.mxu0 0.0
        %858 = vmatpush1.msra.mxu0 %v606
        %859 = vmatprep.subr.mxu0 0.0
        %860 = vmatpush1.msra.mxu0 %v607
        %861 = vmatprep.subr.mxu0 0.0
        %862 = vmatpush1.msra.mxu0 %v608
        %863 = vmatprep.subr.mxu0 0.0
        %864 = vmatpush1.msra.mxu0 %v609
        %865 = vmatprep.subr.mxu0 0.0
        %866 = vmatpush1.msra.mxu0 0.0
        %867 = vmatprep.subr.mxu0 0.0
        %868 = vmatpush1.msra.mxu0 0.0
        %869 = vmatprep.subr.mxu0 0.0
        %870 = vmatpush1.msra.mxu0 0.0
        %871 = vmatprep.subr.mxu0 0.0
        %872 = vmatpush1.msra.mxu0 0.0
        %873 = vmatprep.subr.mxu0 0.0
        %874 = vmatpush1.msra.mxu0 0.0
        %875 = vmatprep.subr.mxu0 0.0
        %876 = vmatpush1.msra.mxu0 0.0
        %877 = vmatprep.subr.mxu0 0.0
        %878 = vmatpush1.msra.mxu0 0.0
        %879 = vmatprep.subr.mxu0 0.0
        %880 = vmatpush1.msra.mxu0 0.0
        %881 = vmatprep.subr.mxu0 0.0
        %882 = vmatpush1.msra.mxu0 0.0
        %883 = vmatprep.subr.mxu0 0.0
        %884 = vmatpush1.msra.mxu0 0.0
        %885 = vmatprep.subr.mxu0 0.0
        %886 = vmatpush1.msra.mxu0 0.0
        %887 = vmatprep.subr.mxu0 0.0
        %888 = vmatpush1.msra.mxu0 0.0
        %889 = vmatprep.subr.mxu0 0.0
        %890 = vmatpush1.msra.mxu0 0.0
        %891 = vmatprep.subr.mxu0 0.0
        %892 = vmatpush1.msra.mxu0 0.0
        %893 = vmatprep.subr.mxu0 0.0
        %894 = vmatpush1.msra.mxu0 0.0
        %895 = vmatprep.subr.mxu0 0.0
        %896 = vmatpush1.msra.mxu0 0.0
        %897 = vmatprep.subr.mxu0 0.0
        %898 = vmatpush1.msra.mxu0 0.0
        %899 = vmatprep.subr.mxu0 0.0
        %900 = vmatpush1.msra.mxu0 0.0
        %901 = vmatprep.subr.mxu0 0.0
        %902 = vmatpush1.msra.mxu0 0.0
        %903 = vmatprep.subr.mxu0 0.0
        %904 = vmatpush1.msra.mxu0 0.0
        %905 = vmatprep.subr.mxu0 0.0
        %906 = vmatpush1.msra.mxu0 0.0
        %907 = vmatprep.subr.mxu0 0.0
        %908 = vmatpush1.msra.mxu0 0.0
        %909 = vmatprep.subr.mxu0 0.0
        %910 = vmatpush1.msra.mxu0 0.0
        %911 = vmatprep.subr.mxu0 0.0
        %912 = vmatpush1.msra.mxu0 0.0
        %913 = vmatprep.subr.mxu0 0.0
        %914 = vmatpush1.msra.mxu0 0.0
        %915 = vmatprep.subr.mxu0 0.0
        %916 = vmatpush1.msra.mxu0 0.0
        %917 = vmatprep.subr.mxu0 0.0
        %918 = vmatpush1.msra.mxu0 0.0
        %919 = vmatprep.subr.mxu0 0.0
        %920 = vmatpush1.msra.mxu0 0.0
        %921 = vmatprep.mubr.f32.mxu0 0.0
        %922 = vmatmul.mubr.f32.gmra.mrb[0].mxu0 %v855
        %v923 = vpop.f32.mrb[0].mxu0
        %v924 = vadd.f32 %v851, %v923
        %v925 = vpop.f32.mrb[0].mxu0
        %926 = vdwg.mxu0
        %927 = vrot.lane.b32.xlu0 %v440, 64
        %v928 = vpop.permute.xlu0 %927
        %929 = vrot.lane.b32.xlu0 %v441, 64
        %v930 = vpop.permute.xlu0 %929
        %v931 = vsel %vm443, %v928, 0
        %v933 = vsel %vm443, %v930, 0
        %935 = vmatprep.subr.mxu0 0.0
        %936 = vmatpush1.xpose.msra.mxu0 %v933
        %937 = vmatprep.subr.mxu0 0.0
        %938 = vmatpush1.xpose.msra.mxu0 0.0
        %939 = vmatprep.subr.mxu0 0.0
        %940 = vmatpush1.xpose.msra.mxu0 0.0
        %941 = vmatprep.subr.mxu0 0.0
        %942 = vmatpush1.xpose.msra.mxu0 0.0
        %943 = vmatprep.subr.mxu0 0.0
        %944 = vmatpush1.xpose.msra.mxu0 0.0
        %945 = vmatprep.subr.mxu0 0.0
        %946 = vmatpush1.xpose.msra.mxu0 0.0
        %947 = vmatprep.subr.mxu0 0.0
        %948 = vmatpush1.xpose.msra.mxu0 0.0
        %949 = vmatprep.subr.mxu0 0.0
        %950 = vmatpush1.xpose.msra.mxu0 0.0
        %951 = vmatprep.subr.mxu0 0.0
        %952 = vmatpush1.xpose.msra.mxu0 0.0
        %953 = vmatprep.subr.mxu0 0.0
        %954 = vmatpush1.xpose.msra.mxu0 0.0
        %955 = vmatprep.subr.mxu0 0.0
        %956 = vmatpush1.xpose.msra.mxu0 0.0
        %957 = vmatprep.subr.mxu0 0.0
        %958 = vmatpush1.xpose.msra.mxu0 0.0
        %959 = vmatprep.subr.mxu0 0.0
        %960 = vmatpush1.xpose.msra.mxu0 0.0
        %961 = vmatprep.subr.mxu0 0.0
        %962 = vmatpush1.xpose.msra.mxu0 0.0
        %963 = vmatprep.subr.mxu0 0.0
        %964 = vmatpush1.xpose.msra.mxu0 0.0
        %965 = vmatprep.subr.mxu0 0.0
        %966 = vmatpush1.xpose.msra.mxu0 0.0
        %967 = vmatprep.subr.mxu0 0.0
        %968 = vmatpush1.xpose.msra.mxu0 0.0
        %969 = vmatprep.subr.mxu0 0.0
        %970 = vmatpush1.xpose.msra.mxu0 0.0
        %971 = vmatprep.subr.mxu0 0.0
        %972 = vmatpush1.xpose.msra.mxu0 0.0
        %973 = vmatprep.subr.mxu0 0.0
        %974 = vmatpush1.xpose.msra.mxu0 0.0
        %975 = vmatprep.subr.mxu0 0.0
        %976 = vmatpush1.xpose.msra.mxu0 0.0
        %977 = vmatprep.subr.mxu0 0.0
        %978 = vmatpush1.xpose.msra.mxu0 0.0
        %979 = vmatprep.subr.mxu0 0.0
        %980 = vmatpush1.xpose.msra.mxu0 0.0
        %981 = vmatprep.subr.mxu0 0.0
        %982 = vmatpush1.xpose.msra.mxu0 0.0
        %983 = vmatprep.subr.mxu0 0.0
        %984 = vmatpush1.xpose.msra.mxu0 0.0
        %985 = vmatprep.subr.mxu0 0.0
        %986 = vmatpush1.xpose.msra.mxu0 0.0
        %987 = vmatprep.subr.mxu0 0.0
        %988 = vmatpush1.xpose.msra.mxu0 0.0
        %989 = vmatprep.subr.mxu0 0.0
        %990 = vmatpush1.xpose.msra.mxu0 0.0
        %991 = vmatprep.subr.mxu0 0.0
        %992 = vmatpush1.xpose.msra.mxu0 0.0
        %993 = vmatprep.subr.mxu0 0.0
        %994 = vmatpush1.xpose.msra.mxu0 0.0
        %995 = vmatprep.subr.mxu0 0.0
        %996 = vmatpush1.xpose.msra.mxu0 0.0
        %997 = vmatprep.subr.mxu0 0.0
        %998 = vmatpush1.xpose.msra.mxu0 0.0
        %999 = vmatprep.mubr.f32.mxu0 0.0
        %1000 = vmatmul.mubr.f32.gmra.mrb[0].mxu0 %v931
        %v1001 = vpop.f32.mrb[0].mxu0
        %v1002 = vadd.f32 0.0, %v1001
        %v1003 = vpop.f32.mrb[0].mxu0
        %1004 = vdwg.mxu0
        %v1005 = vsel %vm439, %v1002, -1e+30
        %v1006 = vsel %vm521, %v1005, -inf
        %1007 = vmax.xlane.f32.xlu0 %v1006
        %v1008 = vpop.xlane.xlu0 %1007
        %v1009 = vsub.f32 %v1005, %v1008
        %v1010 = vmul.f32 %v1009, 1.442695
        %v1011 = vpow.pop %v1010
        %v1012 = vsel %vm521, %v1011, 0.0
        %1013 = vadd.xlane.f32.xlu0 %v1012
        %v1014 = vpop.xlane.xlu0 %1013
        %v1015 = vrcp.pop %v1014
        %v1016 = vmul.f32 %v1011, %v1015
        %1017 = vrot.lane.b32.xlu0 %v442, 64
        %v1018 = vpop.permute.xlu0 %1017
        %v1021 = vsel %vm521, %v1016, 0
        %1023 = vmatprep.subr.mxu0 0.0
        %1024 = vmatpush1.msra.mxu0 %v1018
        %1025 = vmatprep.subr.mxu0 0.0
        %1026 = vmatpush1.msra.mxu0 0.0
        %1027 = vmatprep.subr.mxu0 0.0
        %1028 = vmatpush1.msra.mxu0 0.0
        %1029 = vmatprep.subr.mxu0 0.0
        %1030 = vmatpush1.msra.mxu0 0.0
        %1031 = vmatprep.subr.mxu0 0.0
        %1032 = vmatpush1.msra.mxu0 0.0
        %1033 = vmatprep.subr.mxu0 0.0
        %1034 = vmatpush1.msra.mxu0 0.0
        %1035 = vmatprep.subr.mxu0 0.0
        %1036 = vmatpush1.msra.mxu0 0.0
        %1037 = vmatprep.subr.mxu0 0.0
        %1038 = vmatpush1.msra.mxu0 0.0
        %1039 = vmatprep.subr.mxu0 0.0
        %1040 = vmatpush1.msra.mxu0 0.0
        %1041 = vmatprep.subr.mxu0 0.0
        %1042 = vmatpush1.msra.mxu0 0.0
        %1043 = vmatprep.subr.mxu0 0.0
        %1044 = vmatpush1.msra.mxu0 0.0
        %1045 = vmatprep.subr.mxu0 0.0
        %1046 = vmatpush1.msra.mxu0 0.0
        %1047 = vmatprep.subr.mxu0 0.0
        %1048 = vmatpush1.msra.mxu0 0.0
        %1049 = vmatprep.subr.mxu0 0.0
        %1050 = vmatpush1.msra.mxu0 0.0
        %1051 = vmatprep.subr.mxu0 0.0
        %1052 = vmatpush1.msra.mxu0 0.0
        %1053 = vmatprep.subr.mxu0 0.0
        %1054 = vmatpush1.msra.mxu0 0.0
        %1055 = vmatprep.subr.mxu0 0.0
        %1056 = vmatpush1.msra.mxu0 0.0
        %1057 = vmatprep.subr.mxu0 0.0
        %1058 = vmatpush1.msra.mxu0 0.0
        %1059 = vmatprep.subr.mxu0 0.0
        %1060 = vmatpush1.msra.mxu0 0.0
        %1061 = vmatprep.subr.mxu0 0.0
        %1062 = vmatpush1.msra.mxu0 0.0
        %1063 = vmatprep.subr.mxu0 0.0
        %1064 = vmatpush1.msra.mxu0 0.0
        %1065 = vmatprep.subr.mxu0 0.0
        %1066 = vmatpush1.msra.mxu0 0.0
        %1067 = vmatprep.subr.mxu0 0.0
        %1068 = vmatpush1.msra.mxu0 0.0
        %1069 = vmatprep.subr.mxu0 0.0
        %1070 = vmatpush1.msra.mxu0 0.0
        %1071 = vmatprep.subr.mxu0 0.0
        %1072 = vmatpush1.msra.mxu0 0.0
        %1073 = vmatprep.subr.mxu0 0.0
        %1074 = vmatpush1.msra.mxu0 0.0
        %1075 = vmatprep.subr.mxu0 0.0
        %1076 = vmatpush1.msra.mxu0 0.0
        %1077 = vmatprep.subr.mxu0 0.0
        %1078 = vmatpush1.msra.mxu0 0.0
        %1079 = vmatprep.subr.mxu0 0.0
        %1080 = vmatpush1.msra.mxu0 0.0
        %1081 = vmatprep.subr.mxu0 0.0
        %1082 = vmatpush1.msra.mxu0 0.0
        %1083 = vmatprep.subr.mxu0 0.0
        %1084 = vmatpush1.msra.mxu0 0.0
        %1085 = vmatprep.subr.mxu0 0.0
        %1086 = vmatpush1.msra.mxu0 0.0
        %1087 = vmatprep.mubr.f32.mxu0 0.0
        %1088 = vmatmul.mubr.f32.gmra.mrb[0].mxu0 %v1021
        %v1089 = vpop.f32.mrb[0].mxu0
        %v1090 = vadd.f32 0.0, %v1089
        %v1091 = vpop.f32.mrb[0].mxu0
        %1092 = vdwg.mxu0
        %v1093 = vld [vmem:[#allocation8 + $0x40] sm:$0xff]
        %v1094 = vld [vmem:[#allocation8 + $0x48] sm:$0xff]
        %v1095 = vld [vmem:[#allocation8 + $0x50] sm:$0xff]
        %v1096 = vld [vmem:[#allocation8 + $0x58] sm:$0xff]
        %v1098 = vsel %vm443, %v1090, 0
        %1100 = vmatprep.subr.mxu0 0.0
        %1101 = vmatpush1.msra.mxu0 %v1093
        %1102 = vmatprep.subr.mxu0 0.0
        %1103 = vmatpush1.msra.mxu0 %v1094
        %1104 = vmatprep.subr.mxu0 0.0
        %1105 = vmatpush1.msra.mxu0 %v1095
        %1106 = vmatprep.subr.mxu0 0.0
        %1107 = vmatpush1.msra.mxu0 %v1096
        %1108 = vmatprep.subr.mxu0 0.0
        %1109 = vmatpush1.msra.mxu0 0.0
        %1110 = vmatprep.subr.mxu0 0.0
        %1111 = vmatpush1.msra.mxu0 0.0
        %1112 = vmatprep.subr.mxu0 0.0
        %1113 = vmatpush1.msra.mxu0 0.0
        %1114 = vmatprep.subr.mxu0 0.0
        %1115 = vmatpush1.msra.mxu0 0.0
        %1116 = vmatprep.subr.mxu0 0.0
        %1117 = vmatpush1.msra.mxu0 0.0
        %1118 = vmatprep.subr.mxu0 0.0
        %1119 = vmatpush1.msra.mxu0 0.0
        %1120 = vmatprep.subr.mxu0 0.0
        %1121 = vmatpush1.msra.mxu0 0.0
        %1122 = vmatprep.subr.mxu0 0.0
        %1123 = vmatpush1.msra.mxu0 0.0
        %1124 = vmatprep.subr.mxu0 0.0
        %1125 = vmatpush1.msra.mxu0 0.0
        %1126 = vmatprep.subr.mxu0 0.0
        %1127 = vmatpush1.msra.mxu0 0.0
        %1128 = vmatprep.subr.mxu0 0.0
        %1129 = vmatpush1.msra.mxu0 0.0
        %1130 = vmatprep.subr.mxu0 0.0
        %1131 = vmatpush1.msra.mxu0 0.0
        %1132 = vmatprep.subr.mxu0 0.0
        %1133 = vmatpush1.msra.mxu0 0.0
        %1134 = vmatprep.subr.mxu0 0.0
        %1135 = vmatpush1.msra.mxu0 0.0
        %1136 = vmatprep.subr.mxu0 0.0
        %1137 = vmatpush1.msra.mxu0 0.0
        %1138 = vmatprep.subr.mxu0 0.0
        %1139 = vmatpush1.msra.mxu0 0.0
        %1140 = vmatprep.subr.mxu0 0.0
        %1141 = vmatpush1.msra.mxu0 0.0
        %1142 = vmatprep.subr.mxu0 0.0
        %1143 = vmatpush1.msra.mxu0 0.0
        %1144 = vmatprep.subr.mxu0 0.0
        %1145 = vmatpush1.msra.mxu0 0.0
        %1146 = vmatprep.subr.mxu0 0.0
        %1147 = vmatpush1.msra.mxu0 0.0
        %1148 = vmatprep.subr.mxu0 0.0
        %1149 = vmatpush1.msra.mxu0 0.0
        %1150 = vmatprep.subr.mxu0 0.0
        %1151 = vmatpush1.msra.mxu0 0.0
        %1152 = vmatprep.subr.mxu0 0.0
        %1153 = vmatpush1.msra.mxu0 0.0
        %1154 = vmatprep.subr.mxu0 0.0
        %1155 = vmatpush1.msra.mxu0 0.0
        %1156 = vmatprep.subr.mxu0 0.0
        %1157 = vmatpush1.msra.mxu0 0.0
        %1158 = vmatprep.subr.mxu0 0.0
        %1159 = vmatpush1.msra.mxu0 0.0
        %1160 = vmatprep.subr.mxu0 0.0
        %1161 = vmatpush1.msra.mxu0 0.0
        %1162 = vmatprep.subr.mxu0 0.0
        %1163 = vmatpush1.msra.mxu0 0.0
        %1164 = vmatprep.mubr.f32.mxu0 0.0
        %1165 = vmatmul.mubr.f32.gmra.mrb[0].mxu0 %v1098
        %v1166 = vpop.f32.mrb[0].mxu0
        %v1167 = vadd.f32 0.0, %v1166
        %v1168 = vpop.f32.mrb[0].mxu0
        %1169 = vdwg.mxu0
        %v1170 = vadd.f32 %v924, %v1167
        %1171 = vrot.lane.b32.xlu0 %v440, 32
        %v1172 = vpop.permute.xlu0 %1171
        %1173 = vrot.lane.b32.xlu0 %v441, 32
        %v1174 = vpop.permute.xlu0 %1173
        %v1175 = vsel %vm443, %v1172, 0
        %v1177 = vsel %vm443, %v1174, 0
        %1179 = vmatprep.subr.mxu0 0.0
        %1180 = vmatpush1.xpose.msra.mxu0 %v1177
        %1181 = vmatprep.subr.mxu0 0.0
        %1182 = vmatpush1.xpose.msra.mxu0 0.0
        %1183 = vmatprep.subr.mxu0 0.0
        %1184 = vmatpush1.xpose.msra.mxu0 0.0
        %1185 = vmatprep.subr.mxu0 0.0
        %1186 = vmatpush1.xpose.msra.mxu0 0.0
        %1187 = vmatprep.subr.mxu0 0.0
        %1188 = vmatpush1.xpose.msra.mxu0 0.0
        %1189 = vmatprep.subr.mxu0 0.0
        %1190 = vmatpush1.xpose.msra.mxu0 0.0
        %1191 = vmatprep.subr.mxu0 0.0
        %1192 = vmatpush1.xpose.msra.mxu0 0.0
        %1193 = vmatprep.subr.mxu0 0.0
        %1194 = vmatpush1.xpose.msra.mxu0 0.0
        %1195 = vmatprep.subr.mxu0 0.0
        %1196 = vmatpush1.xpose.msra.mxu0 0.0
        %1197 = vmatprep.subr.mxu0 0.0
        %1198 = vmatpush1.xpose.msra.mxu0 0.0
        %1199 = vmatprep.subr.mxu0 0.0
        %1200 = vmatpush1.xpose.msra.mxu0 0.0
        %1201 = vmatprep.subr.mxu0 0.0
        %1202 = vmatpush1.xpose.msra.mxu0 0.0
        %1203 = vmatprep.subr.mxu0 0.0
        %1204 = vmatpush1.xpose.msra.mxu0 0.0
        %1205 = vmatprep.subr.mxu0 0.0
        %1206 = vmatpush1.xpose.msra.mxu0 0.0
        %1207 = vmatprep.subr.mxu0 0.0
        %1208 = vmatpush1.xpose.msra.mxu0 0.0
        %1209 = vmatprep.subr.mxu0 0.0
        %1210 = vmatpush1.xpose.msra.mxu0 0.0
        %1211 = vmatprep.subr.mxu0 0.0
        %1212 = vmatpush1.xpose.msra.mxu0 0.0
        %1213 = vmatprep.subr.mxu0 0.0
        %1214 = vmatpush1.xpose.msra.mxu0 0.0
        %1215 = vmatprep.subr.mxu0 0.0
        %1216 = vmatpush1.xpose.msra.mxu0 0.0
        %1217 = vmatprep.subr.mxu0 0.0
        %1218 = vmatpush1.xpose.msra.mxu0 0.0
        %1219 = vmatprep.subr.mxu0 0.0
        %1220 = vmatpush1.xpose.msra.mxu0 0.0
        %1221 = vmatprep.subr.mxu0 0.0
        %1222 = vmatpush1.xpose.msra.mxu0 0.0
        %1223 = vmatprep.subr.mxu0 0.0
        %1224 = vmatpush1.xpose.msra.mxu0 0.0
        %1225 = vmatprep.subr.mxu0 0.0
        %1226 = vmatpush1.xpose.msra.mxu0 0.0
        %1227 = vmatprep.subr.mxu0 0.0
        %1228 = vmatpush1.xpose.msra.mxu0 0.0
        %1229 = vmatprep.subr.mxu0 0.0
        %1230 = vmatpush1.xpose.msra.mxu0 0.0
        %1231 = vmatprep.subr.mxu0 0.0
        %1232 = vmatpush1.xpose.msra.mxu0 0.0
        %1233 = vmatprep.subr.mxu0 0.0
        %1234 = vmatpush1.xpose.msra.mxu0 0.0
        %1235 = vmatprep.subr.mxu0 0.0
        %1236 = vmatpush1.xpose.msra.mxu0 0.0
        %1237 = vmatprep.subr.mxu0 0.0
        %1238 = vmatpush1.xpose.msra.mxu0 0.0
        %1239 = vmatprep.subr.mxu0 0.0
        %1240 = vmatpush1.xpose.msra.mxu0 0.0
        %1241 = vmatprep.subr.mxu0 0.0
        %1242 = vmatpush1.xpose.msra.mxu0 0.0
        %1243 = vmatprep.mubr.f32.mxu0 0.0
        %1244 = vmatmul.mubr.f32.gmra.mrb[0].mxu0 %v1175
        %v1245 = vpop.f32.mrb[0].mxu0
        %v1246 = vadd.f32 0.0, %v1245
        %v1247 = vpop.f32.mrb[0].mxu0
        %1248 = vdwg.mxu0
        %v1249 = vsel %vm439, %v1246, -1e+30
        %v1250 = vsel %vm521, %v1249, -inf
        %1251 = vmax.xlane.f32.xlu0 %v1250
        %v1252 = vpop.xlane.xlu0 %1251
        %v1253 = vsub.f32 %v1249, %v1252
        %v1254 = vmul.f32 %v1253, 1.442695
        %v1255 = vpow.pop %v1254
        %v1256 = vsel %vm521, %v1255, 0.0
        %1257 = vadd.xlane.f32.xlu0 %v1256
        %v1258 = vpop.xlane.xlu0 %1257
        %v1259 = vrcp.pop %v1258
        %v1260 = vmul.f32 %v1255, %v1259
        %1261 = vrot.lane.b32.xlu0 %v442, 32
        %v1262 = vpop.permute.xlu0 %1261
        %v1265 = vsel %vm521, %v1260, 0
        %1267 = vmatprep.subr.mxu0 0.0
        %1268 = vmatpush1.msra.mxu0 %v1262
        %1269 = vmatprep.subr.mxu0 0.0
        %1270 = vmatpush1.msra.mxu0 0.0
        %1271 = vmatprep.subr.mxu0 0.0
        %1272 = vmatpush1.msra.mxu0 0.0
        %1273 = vmatprep.subr.mxu0 0.0
        %1274 = vmatpush1.msra.mxu0 0.0
        %1275 = vmatprep.subr.mxu0 0.0
        %1276 = vmatpush1.msra.mxu0 0.0
        %1277 = vmatprep.subr.mxu0 0.0
        %1278 = vmatpush1.msra.mxu0 0.0
        %1279 = vmatprep.subr.mxu0 0.0
        %1280 = vmatpush1.msra.mxu0 0.0
        %1281 = vmatprep.subr.mxu0 0.0
        %1282 = vmatpush1.msra.mxu0 0.0
        %1283 = vmatprep.subr.mxu0 0.0
        %1284 = vmatpush1.msra.mxu0 0.0
        %1285 = vmatprep.subr.mxu0 0.0
        %1286 = vmatpush1.msra.mxu0 0.0
        %1287 = vmatprep.subr.mxu0 0.0
        %1288 = vmatpush1.msra.mxu0 0.0
        %1289 = vmatprep.subr.mxu0 0.0
        %1290 = vmatpush1.msra.mxu0 0.0
        %1291 = vmatprep.subr.mxu0 0.0
        %1292 = vmatpush1.msra.mxu0 0.0
        %1293 = vmatprep.subr.mxu0 0.0
        %1294 = vmatpush1.msra.mxu0 0.0
        %1295 = vmatprep.subr.mxu0 0.0
        %1296 = vmatpush1.msra.mxu0 0.0
        %1297 = vmatprep.subr.mxu0 0.0
        %1298 = vmatpush1.msra.mxu0 0.0
        %1299 = vmatprep.subr.mxu0 0.0
        %1300 = vmatpush1.msra.mxu0 0.0
        %1301 = vmatprep.subr.mxu0 0.0
        %1302 = vmatpush1.msra.mxu0 0.0
        %1303 = vmatprep.subr.mxu0 0.0
        %1304 = vmatpush1.msra.mxu0 0.0
        %1305 = vmatprep.subr.mxu0 0.0
        %1306 = vmatpush1.msra.mxu0 0.0
        %1307 = vmatprep.subr.mxu0 0.0
        %1308 = vmatpush1.msra.mxu0 0.0
        %1309 = vmatprep.subr.mxu0 0.0
        %1310 = vmatpush1.msra.mxu0 0.0
        %1311 = vmatprep.subr.mxu0 0.0
        %1312 = vmatpush1.msra.mxu0 0.0
        %1313 = vmatprep.subr.mxu0 0.0
        %1314 = vmatpush1.msra.mxu0 0.0
        %1315 = vmatprep.subr.mxu0 0.0
        %1316 = vmatpush1.msra.mxu0 0.0
        %1317 = vmatprep.subr.mxu0 0.0
        %1318 = vmatpush1.msra.mxu0 0.0
        %1319 = vmatprep.subr.mxu0 0.0
        %1320 = vmatpush1.msra.mxu0 0.0
        %1321 = vmatprep.subr.mxu0 0.0
        %1322 = vmatpush1.msra.mxu0 0.0
        %1323 = vmatprep.subr.mxu0 0.0
        %1324 = vmatpush1.msra.mxu0 0.0
        %1325 = vmatprep.subr.mxu0 0.0
        %1326 = vmatpush1.msra.mxu0 0.0
        %1327 = vmatprep.subr.mxu0 0.0
        %1328 = vmatpush1.msra.mxu0 0.0
        %1329 = vmatprep.subr.mxu0 0.0
        %1330 = vmatpush1.msra.mxu0 0.0
        %1331 = vmatprep.mubr.f32.mxu0 0.0
        %1332 = vmatmul.mubr.f32.gmra.mrb[0].mxu0 %v1265
        %v1333 = vpop.f32.mrb[0].mxu0
        %v1334 = vadd.f32 0.0, %v1333
        %v1335 = vpop.f32.mrb[0].mxu0
        %1336 = vdwg.mxu0
        %v1337 = vld [vmem:[#allocation8 + $0x60] sm:$0xff]
        %v1338 = vld [vmem:[#allocation8 + $0x68] sm:$0xff]
        %v1339 = vld [vmem:[#allocation8 + $0x70] sm:$0xff]
        %v1340 = vld [vmem:[#allocation8 + $0x78] sm:$0xff]
        %v1342 = vsel %vm443, %v1334, 0
        %1344 = vmatprep.subr.mxu0 0.0
        %1345 = vmatpush1.msra.mxu0 %v1337
        %1346 = vmatprep.subr.mxu0 0.0
        %1347 = vmatpush1.msra.mxu0 %v1338
        %1348 = vmatprep.subr.mxu0 0.0
        %1349 = vmatpush1.msra.mxu0 %v1339
        %1350 = vmatprep.subr.mxu0 0.0
        %1351 = vmatpush1.msra.mxu0 %v1340
        %1352 = vmatprep.subr.mxu0 0.0
        %1353 = vmatpush1.msra.mxu0 0.0
        %1354 = vmatprep.subr.mxu0 0.0
        %1355 = vmatpush1.msra.mxu0 0.0
        %1356 = vmatprep.subr.mxu0 0.0
        %1357 = vmatpush1.msra.mxu0 0.0
        %1358 = vmatprep.subr.mxu0 0.0
        %1359 = vmatpush1.msra.mxu0 0.0
        %1360 = vmatprep.subr.mxu0 0.0
        %1361 = vmatpush1.msra.mxu0 0.0
        %1362 = vmatprep.subr.mxu0 0.0
        %1363 = vmatpush1.msra.mxu0 0.0
        %1364 = vmatprep.subr.mxu0 0.0
        %1365 = vmatpush1.msra.mxu0 0.0
        %1366 = vmatprep.subr.mxu0 0.0
        %1367 = vmatpush1.msra.mxu0 0.0
        %1368 = vmatprep.subr.mxu0 0.0
        %1369 = vmatpush1.msra.mxu0 0.0
        %1370 = vmatprep.subr.mxu0 0.0
        %1371 = vmatpush1.msra.mxu0 0.0
        %1372 = vmatprep.subr.mxu0 0.0
        %1373 = vmatpush1.msra.mxu0 0.0
        %1374 = vmatprep.subr.mxu0 0.0
        %1375 = vmatpush1.msra.mxu0 0.0
        %1376 = vmatprep.subr.mxu0 0.0
        %1377 = vmatpush1.msra.mxu0 0.0
        %1378 = vmatprep.subr.mxu0 0.0
        %1379 = vmatpush1.msra.mxu0 0.0
        %1380 = vmatprep.subr.mxu0 0.0
        %1381 = vmatpush1.msra.mxu0 0.0
        %1382 = vmatprep.subr.mxu0 0.0
        %1383 = vmatpush1.msra.mxu0 0.0
        %1384 = vmatprep.subr.mxu0 0.0
        %1385 = vmatpush1.msra.mxu0 0.0
        %1386 = vmatprep.subr.mxu0 0.0
        %1387 = vmatpush1.msra.mxu0 0.0
        %1388 = vmatprep.subr.mxu0 0.0
        %1389 = vmatpush1.msra.mxu0 0.0
        %1390 = vmatprep.subr.mxu0 0.0
        %1391 = vmatpush1.msra.mxu0 0.0
        %1392 = vmatprep.subr.mxu0 0.0
        %1393 = vmatpush1.msra.mxu0 0.0
        %1394 = vmatprep.subr.mxu0 0.0
        %1395 = vmatpush1.msra.mxu0 0.0
        %1396 = vmatprep.subr.mxu0 0.0
        %1397 = vmatpush1.msra.mxu0 0.0
        %1398 = vmatprep.subr.mxu0 0.0
        %1399 = vmatpush1.msra.mxu0 0.0
        %1400 = vmatprep.subr.mxu0 0.0
        %1401 = vmatpush1.msra.mxu0 0.0
        %1402 = vmatprep.subr.mxu0 0.0
        %1403 = vmatpush1.msra.mxu0 0.0
        %1404 = vmatprep.subr.mxu0 0.0
        %1405 = vmatpush1.msra.mxu0 0.0
        %1406 = vmatprep.subr.mxu0 0.0
        %1407 = vmatpush1.msra.mxu0 0.0
        %1408 = vmatprep.mubr.f32.mxu0 0.0
        %1409 = vmatmul.mubr.f32.gmra.mrb[0].mxu0 %v1342
        %v1410 = vpop.f32.mrb[0].mxu0
        %v1411 = vadd.f32 0.0, %v1410
        %v1412 = vpop.f32.mrb[0].mxu0
        %1413 = vdwg.mxu0
        %v1414 = vadd.f32 %v1170, %v1411
        %v1415 = vld [vmem:[%s3] sm:$0x1]
        %v1417 = vlaneseq
        %v1418 = vshrl.u32 %v1417, 7
        %v1419 = vsub.s32 0, %v1418
        %v1420 = vrot.slane %v1415, %v1419
        %v1422 = vadd.f32 %v1414, %v1420
        %1423 = vst [vmem:[%s241] sm:$0xff] %v1422
        %s1424 = sand.u32 %s119, 1
        %s1425 = scalar_lea.sflag [#allocation5], %s1424
        %s1426 = sand.u32 %s119, 1
        %s1427 = smul.addr %s1426, 8
        %s1428 = scalar_lea.vmem [#allocation9], %s1427
        // Predicated region
        $region49: #{tpu_custom_call.1} parent=35 // pred_check
          %p1429 = pneg %p129
        $region50: #{tpu_custom_call.1} parent=35 // pred_check_branch
          %1431 = sbr.rel (%p1429) target = $region52
        $region51: #{tpu_custom_call.1} parent=35 // pred_region
          %s1433 = ssub.s32 128, 128
          %1434 = vsyncadd %s1425, %s1433
          %s1435 = smul.addr %s22, 128
          %s1436 = scalar_lea.hbm %s4, %s1435
          %s1438 = sshll.u32 %s1428, 4
          %s1439 = int_to_ptr.vmem [resolvable:$true] %s1438
          %1441 = dma.vmem_to_hbm [thread:$0]  %s1439, 128, %s1436, %s1425
        $region52: #{tpu_custom_call.1} parent=35 // pred_fallthru
          _
      $region36: #{tpu_custom_call.1} parent=5 // pred_fallthru
        _
      %p1442 = scmp.le.s32.totalorder 2, %s17
      // Predicated region
      $region53: #{tpu_custom_call.1} parent=5 // pred_check
        %p1443 = pneg %p1442
      $region54: #{tpu_custom_call.1} parent=5 // pred_check_branch
        %1445 = sbr.rel (%p1443) target = $region56
      $region55: #{tpu_custom_call.1} parent=5 // pred_region
        %s1446 = ssub.s32 %s17, 2
        // Predicated region
        $region57: #{tpu_custom_call.1} parent=55 // pred_check
          %p1447 = pneg %p135
        $region58: #{tpu_custom_call.1} parent=55 // pred_check_branch
          %1449 = sbr.rel (%p1447) target = $region60
        $region59: #{tpu_custom_call.1} parent=55 // pred_region
          %s1450 = sand.u32 %s120, 1
          %s1451 = scalar_lea.sflag [#allocation5], %s1450
          %s1452 = sand.u32 %s120, 1
          %s1453 = smul.addr %s1452, 8
          %s1454 = scalar_lea.vmem [#allocation9], %s1453
          %1455 = dma.done %s1451, 128
        $region60: #{tpu_custom_call.1} parent=55 // pred_fallthru
          _
      $region56: #{tpu_custom_call.1} parent=5 // pred_fallthru
        _
    $region6: #{tpu_custom_call.1} parent=1 // loop_footer
      %s21 = sadd.s32 1, %s17
    $region7: #{tpu_custom_call.1} parent=1 // loop_footer_branch
      %16 = sbr.rel target = $region3
    $region8: #{tpu_custom_call.1} parent=1 // loop_exit
      _
    %1456 = vsyncpa [#allocation4], 1
    %s1457 = scalar_lea.sflag [#allocation4], 1
    %1458 = vsyncpa %s1457, 1
    %1459 = vsyncpa [#allocation7], 1
    %1460 = vsyncpa [#allocation5], 1
    %s1461 = scalar_lea.sflag [#allocation5], 1
    %1462 = vsyncpa %s1461, 1

</llo_original>
